<compile_context>
chip_gen: v7x
topology: tpu7x:2x2x1
jax: 0.10.0
libtpu: 0.0.40
codegen_flags: <defaults>
</compile_context>

<pallas_src>
import jax
import jax.numpy as jnp
from jax.experimental import pallas as pl
from jax.experimental.pallas import tpu as pltpu


def _round_up(x, m):
    return ((x + m - 1) // m) * m


def _cdiv(a, b):
    return (a + b - 1) // b


def actor1_kernel(obs_ref, wo_ref, bo_ref, q_ref, e_ref, fold_ref,
                  w1_ref, b1_ref, w2_ref, b2_ref, w3_ref, b3_ref,
                  out_ref):
    cd = wo_ref.dtype                       # MXU operand dtype (f32 or bf16)

    # --- recommender_attention on the flat (TB, S*D) slab ---
    state = jnp.tanh(
        jnp.dot(obs_ref[...], wo_ref[...], preferred_element_type=jnp.float32)
        + bo_ref[...])                                            # (TB, S*D) f32

    # logits[b, s] = <state[b, s*D:(s+1)*D], qw>.  query_embedding bias is
    # dropped: softmax is shift-invariant, so it is a mathematical no-op.
    logits = jnp.dot(state, q_ref[...],
                     preferred_element_type=jnp.float32)          # (TB, S) f32
    m = jnp.max(logits, axis=-1, keepdims=True)
    p = jnp.exp(logits - m)
    att = p / jnp.sum(p, axis=-1, keepdims=True)                  # (TB, S) f32

    att_flat = jnp.dot(att, e_ref[...],
                       preferred_element_type=jnp.float32)        # (TB, S*D) f32
    weighted = state * att_flat                                   # (TB, S*D) f32

    # One well-tiled 32-bit transpose (XLU) so everything downstream — and the
    # output block — is lane-dense with lane dim = batch tile.
    weighted_t = weighted.T                                       # (S*D, TB) f32
    o_t = jnp.dot(fold_ref[...], weighted_t,
                  preferred_element_type=jnp.float32)             # (D, TB) f32 (mean over S folded in)

    # --- MLP head, transposed orientation: tanh(FC1) -> relu(FC2) -> FC3 ---
    h1 = jnp.tanh(
        jnp.dot(w1_ref[...], o_t.astype(cd),
                preferred_element_type=jnp.float32) + b1_ref[...])        # (32, TB)
    h2 = jnp.maximum(
        jnp.dot(w2_ref[...], h1.astype(cd),
                preferred_element_type=jnp.float32) + b2_ref[...], 0.0)   # (128, TB)
    out_t = (jnp.dot(w3_ref[...], h2.astype(cd),
                     preferred_element_type=jnp.float32) + b3_ref[...])   # (D, TB)
    out_ref[...] = out_t.astype(out_ref.dtype)


def _choose_batch_tile(B, block_b):
    """Batch tile: multiple of 128, ~block_b rows, >=2 grid steps when possible."""
    block_b = max(128, _round_up(block_b, 128))
    rb = _round_up(B, 128)
    if rb < 256:
        return 128
    # Prefer at least two tiles so both v7x TensorCores get work.
    return max(128, min(block_b, _round_up(rb, 256) // 2))


def actor1_forward(obs, params, *, block_b=2048, compute_dtype=jnp.float32):
    """Actor1 forward.  obs: (B, S, D) float32.  params: see make_params().

    On v6e/v7x pass compute_dtype=jnp.bfloat16 to halve the HBM traffic of the
    obs stream (biases / softmax / accumulation stay float32).
    """
    B, S, D = obs.shape
    F = S * D
    obs_flat = obs.reshape(B, F)                     # free row-major view

    (wo, bo, qw, _qb, w1, b1, w2, b2, w3, b3) = params  # qb unused (softmax shift-invariance)

    f32 = jnp.float32
    eye_s = jnp.eye(S, dtype=f32)
    # Block-diagonal W_o + attention helper matrices (tiny; constant-folded under jit).
    wo_blk = jnp.kron(eye_s, wo).astype(compute_dtype)                    # (F, F)
    bo_t = jnp.tile(bo, (1, S)).astype(f32)                               # (1, F)
    q_mat = jnp.kron(eye_s, qw.T).astype(f32)                             # (F, S)
    e_mat = jnp.kron(eye_s, jnp.ones((1, D), f32))                        # (S, F)
    fold = jnp.kron(jnp.ones((1, S), f32), jnp.eye(D, dtype=f32)) / S     # (D, F)
    w1t, b1t = w1.T.astype(compute_dtype), b1.T.astype(f32)               # (32, D), (32, 1)
    w2t, b2t = w2.T.astype(compute_dtype), b2.T.astype(f32)               # (128, 32), (128, 1)
    w3t, b3t = w3.T.astype(compute_dtype), b3.T.astype(f32)               # (D, 128), (D, 1)

    obs_c = obs_flat.astype(compute_dtype)

    TB = _choose_batch_tile(B, block_b)
    n_tiles = _cdiv(B, TB)
    Bp = n_tiles * TB
    if B < TB:
        # Tiny batch: a one-off pad copy is negligible.  For B >= TB we do NOT
        # jnp.pad the whole tensor (that would be an extra HBM pass over obs);
        # the tail tile uses Pallas' partial-final-block handling instead —
        # all math is row-local so the OOB rows only yield garbage columns
        # that are sliced away below.
        obs_c = jnp.pad(obs_c, ((0, TB - B), (0, 0)))

    def _const(a):
        # Weights/biases: one full block, revisited with a constant block
        # index each step (no per-step re-DMA needed; pl.Buffered(1) would be
        # an alternative but is unnecessary at this size).
        return pl.BlockSpec(a.shape, lambda b: (0, 0))

    out_t = pl.pallas_call(
        actor1_kernel,
        out_shape=jax.ShapeDtypeStruct((D, Bp), jnp.float32),
        grid_spec=pltpu.PrefetchScalarGridSpec(
            num_scalar_prefetch=0,
            grid=(n_tiles,),
            in_specs=[
                pl.BlockSpec((TB, F), lambda b: (b, 0)),    # lane-dense obs tile
                _const(wo_blk), _const(bo_t),
                _const(q_mat), _const(e_mat), _const(fold),
                _const(w1t), _const(b1t),
                _const(w2t), _const(b2t),
                _const(w3t), _const(b3t),
            ],
            out_specs=pl.BlockSpec((D, TB), lambda b: (0, b)),   # lane-dense output
        ),
        compiler_params=pltpu.CompilerParams(
            dimension_semantics=("parallel",),
            vmem_limit_bytes=48 * 1024 * 1024),
    )(obs_c, wo_blk, bo_t, q_mat, e_mat, fold,
      w1t, b1t, w2t, b2t, w3t, b3t)

    return out_t[:, :B].T                                        # (B, D)


def make_params(key, dim_action):
    ks = jax.random.split(key, 10)
    f32 = jnp.float32
    # recommender_attention.W_o : Linear(D, D)
    wo = jax.random.normal(ks[0], (dim_action, dim_action), f32) * 0.1
    bo = jax.random.normal(ks[1], (1, dim_action), f32) * 0.1
    # recommender_attention.query_embedding : Linear(D, 1) (weight stored as a row)
    qw = jax.random.normal(ks[2], (1, dim_action), f32) * 0.1
    qb = jax.random.normal(ks[3], (1, 1), f32) * 0.1
    # FC1 : Linear(D, 32), weights ~ N(0, 0.1) as in the torch module
    w1 = jax.random.normal(ks[4], (dim_action, 32), f32) * 0.1
    b1 = jax.random.normal(ks[5], (1, 32), f32) * 0.1
    # FC2 : Linear(32, 128)
    w2 = jax.random.normal(ks[6], (32, 128), f32) * 0.1
    b2 = jax.random.normal(ks[7], (1, 128), f32) * 0.1
    # FC3 : Linear(128, D)
    w3 = jax.random.normal(ks[8], (128, dim_action), f32) * 0.1
    b3 = jax.random.normal(ks[9], (1, dim_action), f32) * 0.1
    return (wo, bo, qw, qb, w1, b1, w2, b2, w3, b3)


def actor1_reference(obs, params):
    (wo, bo, qw, qb, w1, b1, w2, b2, w3, b3) = params
    state = jnp.tanh(obs @ wo + bo[0])                               # (B, S, D)
    logits = jnp.sum(state * qw, axis=-1, keepdims=True) + qb[0, 0]  # (B, S, 1)
    att = jax.nn.softmax(logits, axis=1)                             # softmax over seq
    O = jnp.mean(state * att, axis=1)                                # (B, D)
    h1 = jnp.tanh(O @ w1 + b1[0])
    h2 = jax.nn.relu(h1 @ w2 + b2[0])
    return h2 @ w3 + b3[0]


if __name__ == "__main__":
    B, S, D = 6, 8, 16   # batch, sequence/items, dim_action
    key = jax.random.PRNGKey(0)
    k_obs, k_par = jax.random.split(key)
    obs = jax.random.normal(k_obs, (B, S, D), jnp.float32)
    params = make_params(k_par, D)
    ref = actor1_reference(obs, params)

    # 1) f32 path, tiny batch (single padded 128-row tile).
    out = jax.block_until_ready(actor1_forward(obs, params))
    assert out.shape == (B, D)
    err = float(jnp.max(jnp.abs(out - ref)))
    assert err < 1e-4, f"f32 path mismatch vs JAX reference, max abs err={err}"

    # 2) f32 path, multi-tile grid with a partial tail block (no input padding).
    B2 = 300
    obs2 = jax.random.normal(jax.random.PRNGKey(1), (B2, S, D), jnp.float32)
    out2 = jax.block_until_ready(actor1_forward(obs2, params, block_b=256))
    ref2 = actor1_reference(obs2, params)
    assert out2.shape == (B2, D)
    err2 = float(jnp.max(jnp.abs(out2 - ref2)))
    assert err2 < 1e-4, f"multi-tile path mismatch, max abs err={err2}"

    # 3) bf16 obs/weight stream (v6e/v7x fast path) — loose tolerance.
    out_bf = jax.block_until_ready(
        actor1_forward(obs, params, compute_dtype=jnp.bfloat16))
    err_bf = float(jnp.max(jnp.abs(out_bf - ref)))
    assert err_bf < 1e-1, f"bf16 path mismatch, max abs err={err_bf}"

    print("KERNEL_OK")
</pallas_src>

<mosaic_0001>
module attributes {stable_mosaic.version = 11 : i64} {
  func.func @actor1_kernel(%arg0: i32, %arg1: memref<128x128xf32, #tpu.memory_space<vmem>>, %arg2: memref<128x128xf32, #tpu.memory_space<vmem>>, %arg3: memref<1x128xf32, #tpu.memory_space<vmem>>, %arg4: memref<128x8xf32, #tpu.memory_space<vmem>>, %arg5: memref<8x128xf32, #tpu.memory_space<vmem>>, %arg6: memref<16x128xf32, #tpu.memory_space<vmem>>, %arg7: memref<32x16xf32, #tpu.memory_space<vmem>>, %arg8: memref<32x1xf32, #tpu.memory_space<vmem>>, %arg9: memref<128x32xf32, #tpu.memory_space<vmem>>, %arg10: memref<128x1xf32, #tpu.memory_space<vmem>>, %arg11: memref<16x128xf32, #tpu.memory_space<vmem>>, %arg12: memref<16x1xf32, #tpu.memory_space<vmem>>, %arg13: memref<16x128xf32, #tpu.memory_space<vmem>>) attributes {dimension_semantics = [#tpu.dimension_semantics<parallel>], iteration_bounds = array<i64: 1>, scalar_prefetch = 0 : i64, scratch_operands = 0 : i64, tpu.core_type = #tpu.core_type<tc>, window_params = [{transform_indices = @transform_0, window_bounds = array<i64: 128, 128>}, {pipeline_mode = #tpu.pipeline_mode<synchronous>, transform_indices = @transform_1, window_bounds = array<i64: 128, 128>}, {pipeline_mode = #tpu.pipeline_mode<synchronous>, transform_indices = @transform_2, window_bounds = array<i64: 1, 128>}, {pipeline_mode = #tpu.pipeline_mode<synchronous>, transform_indices = @transform_3, window_bounds = array<i64: 128, 8>}, {pipeline_mode = #tpu.pipeline_mode<synchronous>, transform_indices = @transform_4, window_bounds = array<i64: 8, 128>}, {pipeline_mode = #tpu.pipeline_mode<synchronous>, transform_indices = @transform_5, window_bounds = array<i64: 16, 128>}, {pipeline_mode = #tpu.pipeline_mode<synchronous>, transform_indices = @transform_6, window_bounds = array<i64: 32, 16>}, {pipeline_mode = #tpu.pipeline_mode<synchronous>, transform_indices = @transform_7, window_bounds = array<i64: 32, 1>}, {pipeline_mode = #tpu.pipeline_mode<synchronous>, transform_indices = @transform_8, window_bounds = array<i64: 128, 32>}, {pipeline_mode = #tpu.pipeline_mode<synchronous>, transform_indices = @transform_9, window_bounds = array<i64: 128, 1>}, {pipeline_mode = #tpu.pipeline_mode<synchronous>, transform_indices = @transform_10, window_bounds = array<i64: 16, 128>}, {pipeline_mode = #tpu.pipeline_mode<synchronous>, transform_indices = @transform_11, window_bounds = array<i64: 16, 1>}, {transform_indices = @transform_12, window_bounds = array<i64: 16, 128>}]} {
    %c0 = arith.constant 0 : index
    %c0_0 = arith.constant 0 : index
    %0 = vector.load %arg1[%c0, %c0_0] : memref<128x128xf32, #tpu.memory_space<vmem>>, vector<128x128xf32>
    %c0_1 = arith.constant 0 : index
    %c0_2 = arith.constant 0 : index
    %1 = vector.load %arg2[%c0_1, %c0_2] : memref<128x128xf32, #tpu.memory_space<vmem>>, vector<128x128xf32>
    %cst = arith.constant dense<0.000000e+00> : vector<128x128xf32>
    %2 = tpu.matmul %0, %1, %cst {dimension_numbers = #tpu.dot_dimension_numbers<[1], [0], [0], [1], [0, 0, 1, 1], [], []>} : vector<128x128xf32>, vector<128x128xf32>, vector<128x128xf32> -> vector<128x128xf32>
    %c0_3 = arith.constant 0 : index
    %c0_4 = arith.constant 0 : index
    %3 = vector.load %arg3[%c0_3, %c0_4] : memref<1x128xf32, #tpu.memory_space<vmem>>, vector<1x128xf32>
    %4 = vector.broadcast %3 : vector<1x128xf32> to vector<128x128xf32>
    %5 = arith.addf %2, %4 : vector<128x128xf32>
    %6 = math.tanh %5 : vector<128x128xf32>
    %c0_5 = arith.constant 0 : index
    %c0_6 = arith.constant 0 : index
    %7 = vector.load %arg4[%c0_5, %c0_6] : memref<128x8xf32, #tpu.memory_space<vmem>>, vector<128x8xf32>
    %cst_7 = arith.constant dense<0.000000e+00> : vector<128x8xf32>
    %8 = tpu.matmul %6, %7, %cst_7 {dimension_numbers = #tpu.dot_dimension_numbers<[1], [0], [0], [1], [0, 0, 1, 1], [], []>} : vector<128x128xf32>, vector<128x8xf32>, vector<128x8xf32> -> vector<128x8xf32>
    %cst_8 = arith.constant dense<0xFF800000> : vector<128xf32>
    %9 = vector.multi_reduction <maximumf>, %8, %cst_8 [1] : vector<128x8xf32> to vector<128xf32>
    %10 = vector.shape_cast %9 : vector<128xf32> to vector<128x1xf32>
    %11 = vector.broadcast %10 : vector<128x1xf32> to vector<128x8xf32>
    %12 = arith.subf %8, %11 : vector<128x8xf32>
    %13 = math.exp %12 : vector<128x8xf32>
    %cst_9 = arith.constant dense<0.000000e+00> : vector<128xf32>
    %14 = vector.multi_reduction <add>, %13, %cst_9 [1] : vector<128x8xf32> to vector<128xf32>
    %15 = vector.shape_cast %14 : vector<128xf32> to vector<128x1xf32>
    %16 = vector.broadcast %15 : vector<128x1xf32> to vector<128x8xf32>
    %17 = arith.divf %13, %16 : vector<128x8xf32>
    %c0_10 = arith.constant 0 : index
    %c0_11 = arith.constant 0 : index
    %18 = vector.load %arg5[%c0_10, %c0_11] : memref<8x128xf32, #tpu.memory_space<vmem>>, vector<8x128xf32>
    %cst_12 = arith.constant dense<0.000000e+00> : vector<128x128xf32>
    %19 = tpu.matmul %17, %18, %cst_12 {dimension_numbers = #tpu.dot_dimension_numbers<[1], [0], [0], [1], [0, 0, 1, 1], [], []>} : vector<128x8xf32>, vector<8x128xf32>, vector<128x128xf32> -> vector<128x128xf32>
    %20 = arith.mulf %6, %19 : vector<128x128xf32>
    %21 = tpu.transpose %20, [1, 0] : vector<128x128xf32> -> vector<128x128xf32>
    %c0_13 = arith.constant 0 : index
    %c0_14 = arith.constant 0 : index
    %22 = vector.load %arg6[%c0_13, %c0_14] : memref<16x128xf32, #tpu.memory_space<vmem>>, vector<16x128xf32>
    %cst_15 = arith.constant dense<0.000000e+00> : vector<16x128xf32>
    %23 = tpu.matmul %22, %21, %cst_15 {dimension_numbers = #tpu.dot_dimension_numbers<[1], [0], [0], [1], [0, 0, 1, 1], [], []>} : vector<16x128xf32>, vector<128x128xf32>, vector<16x128xf32> -> vector<16x128xf32>
    %c0_16 = arith.constant 0 : index
    %c0_17 = arith.constant 0 : index
    %24 = vector.load %arg7[%c0_16, %c0_17] : memref<32x16xf32, #tpu.memory_space<vmem>>, vector<32x16xf32>
    %cst_18 = arith.constant dense<0.000000e+00> : vector<32x128xf32>
    %25 = tpu.matmul %24, %23, %cst_18 {dimension_numbers = #tpu.dot_dimension_numbers<[1], [0], [0], [1], [0, 0, 1, 1], [], []>} : vector<32x16xf32>, vector<16x128xf32>, vector<32x128xf32> -> vector<32x128xf32>
    %c0_19 = arith.constant 0 : index
    %c0_20 = arith.constant 0 : index
    %26 = vector.load %arg8[%c0_19, %c0_20] : memref<32x1xf32, #tpu.memory_space<vmem>>, vector<32x1xf32>
    %27 = vector.broadcast %26 : vector<32x1xf32> to vector<32x128xf32>
    %28 = arith.addf %25, %27 : vector<32x128xf32>
    %29 = math.tanh %28 : vector<32x128xf32>
    %c0_21 = arith.constant 0 : index
    %c0_22 = arith.constant 0 : index
    %30 = vector.load %arg9[%c0_21, %c0_22] : memref<128x32xf32, #tpu.memory_space<vmem>>, vector<128x32xf32>
    %cst_23 = arith.constant dense<0.000000e+00> : vector<128x128xf32>
    %31 = tpu.matmul %30, %29, %cst_23 {dimension_numbers = #tpu.dot_dimension_numbers<[1], [0], [0], [1], [0, 0, 1, 1], [], []>} : vector<128x32xf32>, vector<32x128xf32>, vector<128x128xf32> -> vector<128x128xf32>
    %c0_24 = arith.constant 0 : index
    %c0_25 = arith.constant 0 : index
    %32 = vector.load %arg10[%c0_24, %c0_25] : memref<128x1xf32, #tpu.memory_space<vmem>>, vector<128x1xf32>
    %33 = vector.broadcast %32 : vector<128x1xf32> to vector<128x128xf32>
    %34 = arith.addf %31, %33 : vector<128x128xf32>
    %cst_26 = arith.constant 0.000000e+00 : f32
    %35 = vector.broadcast %cst_26 : f32 to vector<128x128xf32>
    %36 = arith.maximumf %34, %35 : vector<128x128xf32>
    %c0_27 = arith.constant 0 : index
    %c0_28 = arith.constant 0 : index
    %37 = vector.load %arg11[%c0_27, %c0_28] : memref<16x128xf32, #tpu.memory_space<vmem>>, vector<16x128xf32>
    %cst_29 = arith.constant dense<0.000000e+00> : vector<16x128xf32>
    %38 = tpu.matmul %37, %36, %cst_29 {dimension_numbers = #tpu.dot_dimension_numbers<[1], [0], [0], [1], [0, 0, 1, 1], [], []>} : vector<16x128xf32>, vector<128x128xf32>, vector<16x128xf32> -> vector<16x128xf32>
    %c0_30 = arith.constant 0 : index
    %c0_31 = arith.constant 0 : index
    %39 = vector.load %arg12[%c0_30, %c0_31] : memref<16x1xf32, #tpu.memory_space<vmem>>, vector<16x1xf32>
    %40 = vector.broadcast %39 : vector<16x1xf32> to vector<16x128xf32>
    %41 = arith.addf %38, %40 : vector<16x128xf32>
    %c0_32 = arith.constant 0 : index
    %c0_33 = arith.constant 0 : index
    %42 = vector.load %arg13[%c0_32, %c0_33] : memref<16x128xf32, #tpu.memory_space<vmem>>, vector<16x128xf32>
    tpu.vector_store %arg13[%c0_32, %c0_33], %41 {strides = array<i32>} : memref<16x128xf32, #tpu.memory_space<vmem>>, vector<16x128xf32>,
    return
  }
  func.func @transform_0(%arg0: i32) -> (i32, i32) {
    %c0_i32 = arith.constant 0 : i32
    %c0_i32_0 = arith.constant 0 : i32
    return %arg0, %c0_i32 : i32, i32
  }
  func.func @transform_1(%arg0: i32) -> (i32, i32) {
    %c0_i32 = arith.constant 0 : i32
    %c0_i32_0 = arith.constant 0 : i32
    %c0_i32_1 = arith.constant 0 : i32
    return %c0_i32, %c0_i32_0 : i32, i32
  }
  func.func @transform_2(%arg0: i32) -> (i32, i32) {
    %c0_i32 = arith.constant 0 : i32
    %c0_i32_0 = arith.constant 0 : i32
    %c0_i32_1 = arith.constant 0 : i32
    return %c0_i32, %c0_i32_0 : i32, i32
  }
  func.func @transform_3(%arg0: i32) -> (i32, i32) {
    %c0_i32 = arith.constant 0 : i32
    %c0_i32_0 = arith.constant 0 : i32
    %c0_i32_1 = arith.constant 0 : i32
    return %c0_i32, %c0_i32_0 : i32, i32
  }
  func.func @transform_4(%arg0: i32) -> (i32, i32) {
    %c0_i32 = arith.constant 0 : i32
    %c0_i32_0 = arith.constant 0 : i32
    %c0_i32_1 = arith.constant 0 : i32
    return %c0_i32, %c0_i32_0 : i32, i32
  }
  func.func @transform_5(%arg0: i32) -> (i32, i32) {
    %c0_i32 = arith.constant 0 : i32
    %c0_i32_0 = arith.constant 0 : i32
    %c0_i32_1 = arith.constant 0 : i32
    return %c0_i32, %c0_i32_0 : i32, i32
  }
  func.func @transform_6(%arg0: i32) -> (i32, i32) {
    %c0_i32 = arith.constant 0 : i32
    %c0_i32_0 = arith.constant 0 : i32
    %c0_i32_1 = arith.constant 0 : i32
    return %c0_i32, %c0_i32_0 : i32, i32
  }
  func.func @transform_7(%arg0: i32) -> (i32, i32) {
    %c0_i32 = arith.constant 0 : i32
    %c0_i32_0 = arith.constant 0 : i32
    %c0_i32_1 = arith.constant 0 : i32
    return %c0_i32, %c0_i32_0 : i32, i32
  }
  func.func @transform_8(%arg0: i32) -> (i32, i32) {
    %c0_i32 = arith.constant 0 : i32
    %c0_i32_0 = arith.constant 0 : i32
    %c0_i32_1 = arith.constant 0 : i32
    return %c0_i32, %c0_i32_0 : i32, i32
  }
  func.func @transform_9(%arg0: i32) -> (i32, i32) {
    %c0_i32 = arith.constant 0 : i32
    %c0_i32_0 = arith.constant 0 : i32
    %c0_i32_1 = arith.constant 0 : i32
    return %c0_i32, %c0_i32_0 : i32, i32
  }
  func.func @transform_10(%arg0: i32) -> (i32, i32) {
    %c0_i32 = arith.constant 0 : i32
    %c0_i32_0 = arith.constant 0 : i32
    %c0_i32_1 = arith.constant 0 : i32
    return %c0_i32, %c0_i32_0 : i32, i32
  }
  func.func @transform_11(%arg0: i32) -> (i32, i32) {
    %c0_i32 = arith.constant 0 : i32
    %c0_i32_0 = arith.constant 0 : i32
    %c0_i32_1 = arith.constant 0 : i32
    return %c0_i32, %c0_i32_0 : i32, i32
  }
  func.func @transform_12(%arg0: i32) -> (i32, i32) {
    %c0_i32 = arith.constant 0 : i32
    %c0_i32_0 = arith.constant 0 : i32
    return %c0_i32, %arg0 : i32, i32
  }
}

</mosaic_0001>

<llo_original>
// kernel: tpu_custom_call.1
$region0: #{tpu_custom_call.1}
  #allocation0 [shape = 'u32[]', space=smem, size = 0x4, offset = 0x4, fixed_abs, tag = 'smem constant byte address 0x4 - core index']
  #allocation1 [shape = 'u32[144,128]{1,0:T(1,128)}', space=vmem, size = 0x12000, scoped, tag = 'internal scratch']
  %s0 = inlined_call_operand.vmem [shape: f32[128,128], index: 0, kind: input, shape index: {}]
  %s1 = inlined_call_operand.vmem [shape: f32[128,128], index: 1, kind: input, shape index: {}]
  %s2 = inlined_call_operand.vmem [shape: f32[1,128], index: 2, kind: input, shape index: {}]
  %s3 = inlined_call_operand.vmem [shape: f32[128,8], index: 3, kind: input, shape index: {}]
  %s4 = inlined_call_operand.vmem [shape: f32[8,128], index: 4, kind: input, shape index: {}]
  %s5 = inlined_call_operand.vmem [shape: f32[16,128], index: 5, kind: input, shape index: {}]
  %s6 = inlined_call_operand.vmem [shape: f32[32,16], index: 6, kind: input, shape index: {}]
  %s7 = inlined_call_operand.vmem [shape: f32[32,1], index: 7, kind: input, shape index: {}]
  %s8 = inlined_call_operand.vmem [shape: f32[128,32], index: 8, kind: input, shape index: {}]
  %s9 = inlined_call_operand.vmem [shape: f32[128,1], index: 9, kind: input, shape index: {}]
  %s10 = inlined_call_operand.vmem [shape: f32[16,128], index: 10, kind: input, shape index: {}]
  %s11 = inlined_call_operand.vmem [shape: f32[16,1], index: 11, kind: input, shape index: {}]
  %s12 = inlined_call_operand.hbm [shape: f32[16,128], index: 12, kind: output, shape index: {}]
  %s13 = sld [smem:[#allocation0]]
  $region58: #{tpu_custom_call.1} parent=0
    _
  %s15 = ssub.s32 1, %s13
  %s16 = scalar_select 0, %s15, %s13
  $region1: #{tpu_custom_call.1} parent=0
    #allocation2 [shape = 'u8[8192]{0}', space=vmem, size = 0x2000, scoped, tag = 'output window, operand 0, single buffered']
    #allocation3 [shape = 's32[1]{0}', space=sflag, size = 0x4, scoped, tag = 'scoped memory for tpu_custom_call.1']
    %17 = vsyncpa [#allocation3], 0
    // Predicated region
    $region2: #{tpu_custom_call.1} parent=1 // pred_check
      _
    $region3: #{tpu_custom_call.1} parent=1 // pred_check_branch
      %19 = sbr.rel (0) target = $region5
    $region4: #{tpu_custom_call.1} parent=1 // pred_region
      _
    $region5: #{tpu_custom_call.1} parent=1 // pred_fallthru
      _
    // Predicated region
    $region6: #{tpu_custom_call.1} parent=1 // pred_check
      _
    $region7: #{tpu_custom_call.1} parent=1 // pred_check_branch
      %21 = sbr.rel (0) target = $region9
    $region8: #{tpu_custom_call.1} parent=1 // pred_region
      _
    $region9: #{tpu_custom_call.1} parent=1 // pred_fallthru
      _
    // Predicated region
    $region10: #{tpu_custom_call.1} parent=1 // pred_check
      _
    $region11: #{tpu_custom_call.1} parent=1 // pred_check_branch
      %23 = sbr.rel (0) target = $region13
    $region12: #{tpu_custom_call.1} parent=1 // pred_region
      _
    $region13: #{tpu_custom_call.1} parent=1 // pred_fallthru
      _
    // Predicated region
    $region14: #{tpu_custom_call.1} parent=1 // pred_check
      _
    $region15: #{tpu_custom_call.1} parent=1 // pred_check_branch
      %25 = sbr.rel (0) target = $region17
    $region16: #{tpu_custom_call.1} parent=1 // pred_region
      _
    $region17: #{tpu_custom_call.1} parent=1 // pred_fallthru
      _
    // Predicated region
    $region18: #{tpu_custom_call.1} parent=1 // pred_check
      _
    $region19: #{tpu_custom_call.1} parent=1 // pred_check_branch
      %27 = sbr.rel (0) target = $region21
    $region20: #{tpu_custom_call.1} parent=1 // pred_region
      _
    $region21: #{tpu_custom_call.1} parent=1 // pred_fallthru
      _
    // Predicated region
    $region22: #{tpu_custom_call.1} parent=1 // pred_check
      _
    $region23: #{tpu_custom_call.1} parent=1 // pred_check_branch
      %29 = sbr.rel (0) target = $region25
    $region24: #{tpu_custom_call.1} parent=1 // pred_region
      _
    $region25: #{tpu_custom_call.1} parent=1 // pred_fallthru
      _
    // Predicated region
    $region26: #{tpu_custom_call.1} parent=1 // pred_check
      _
    $region27: #{tpu_custom_call.1} parent=1 // pred_check_branch
      %31 = sbr.rel (0) target = $region29
    $region28: #{tpu_custom_call.1} parent=1 // pred_region
      _
    $region29: #{tpu_custom_call.1} parent=1 // pred_fallthru
      _
    // Predicated region
    $region30: #{tpu_custom_call.1} parent=1 // pred_check
      _
    $region31: #{tpu_custom_call.1} parent=1 // pred_check_branch
      %33 = sbr.rel (0) target = $region33
    $region32: #{tpu_custom_call.1} parent=1 // pred_region
      _
    $region33: #{tpu_custom_call.1} parent=1 // pred_fallthru
      _
    // Predicated region
    $region34: #{tpu_custom_call.1} parent=1 // pred_check
      _
    $region35: #{tpu_custom_call.1} parent=1 // pred_check_branch
      %35 = sbr.rel (0) target = $region37
    $region36: #{tpu_custom_call.1} parent=1 // pred_region
      _
    $region37: #{tpu_custom_call.1} parent=1 // pred_fallthru
      _
    // Predicated region
    $region38: #{tpu_custom_call.1} parent=1 // pred_check
      _
    $region39: #{tpu_custom_call.1} parent=1 // pred_check_branch
      %37 = sbr.rel (0) target = $region41
    $region40: #{tpu_custom_call.1} parent=1 // pred_region
      _
    $region41: #{tpu_custom_call.1} parent=1 // pred_fallthru
      _
    // Predicated region
    $region42: #{tpu_custom_call.1} parent=1 // pred_check
      _
    $region43: #{tpu_custom_call.1} parent=1 // pred_check_branch
      %39 = sbr.rel (0) target = $region45
    $region44: #{tpu_custom_call.1} parent=1 // pred_region
      _
    $region45: #{tpu_custom_call.1} parent=1 // pred_fallthru
      _
    // Predicated region
    $region46: #{tpu_custom_call.1} parent=1 // pred_check
      _
    $region47: #{tpu_custom_call.1} parent=1 // pred_check_branch
      %41 = sbr.rel (0) target = $region49
    $region48: #{tpu_custom_call.1} parent=1 // pred_region
      _
    $region49: #{tpu_custom_call.1} parent=1 // pred_fallthru
      _
    %v42 = vld [vmem:[%s0] sm:$0xff]
    %v43 = vld [vmem:[%s0 + $0x8] sm:$0xff]
    %v44 = vld [vmem:[%s0 + $0x10] sm:$0xff]
    %v45 = vld [vmem:[%s0 + $0x18] sm:$0xff]
    %v46 = vld [vmem:[%s0 + $0x20] sm:$0xff]
    %v47 = vld [vmem:[%s0 + $0x28] sm:$0xff]
    %v48 = vld [vmem:[%s0 + $0x30] sm:$0xff]
    %v49 = vld [vmem:[%s0 + $0x38] sm:$0xff]
    %v50 = vld [vmem:[%s0 + $0x40] sm:$0xff]
    %v51 = vld [vmem:[%s0 + $0x48] sm:$0xff]
    %v52 = vld [vmem:[%s0 + $0x50] sm:$0xff]
    %v53 = vld [vmem:[%s0 + $0x58] sm:$0xff]
    %v54 = vld [vmem:[%s0 + $0x60] sm:$0xff]
    %v55 = vld [vmem:[%s0 + $0x68] sm:$0xff]
    %v56 = vld [vmem:[%s0 + $0x70] sm:$0xff]
    %v57 = vld [vmem:[%s0 + $0x78] sm:$0xff]
    %v58 = vld [vmem:[%s1] sm:$0xff]
    %v59 = vld [vmem:[%s1 + $0x8] sm:$0xff]
    %v60 = vld [vmem:[%s1 + $0x10] sm:$0xff]
    %v61 = vld [vmem:[%s1 + $0x18] sm:$0xff]
    %v62 = vld [vmem:[%s1 + $0x20] sm:$0xff]
    %v63 = vld [vmem:[%s1 + $0x28] sm:$0xff]
    %v64 = vld [vmem:[%s1 + $0x30] sm:$0xff]
    %v65 = vld [vmem:[%s1 + $0x38] sm:$0xff]
    %v66 = vld [vmem:[%s1 + $0x40] sm:$0xff]
    %v67 = vld [vmem:[%s1 + $0x48] sm:$0xff]
    %v68 = vld [vmem:[%s1 + $0x50] sm:$0xff]
    %v69 = vld [vmem:[%s1 + $0x58] sm:$0xff]
    %v70 = vld [vmem:[%s1 + $0x60] sm:$0xff]
    %v71 = vld [vmem:[%s1 + $0x68] sm:$0xff]
    %v72 = vld [vmem:[%s1 + $0x70] sm:$0xff]
    %v73 = vld [vmem:[%s1 + $0x78] sm:$0xff]
    %v74 = vld [vmem:[%s2] sm:$0x1]
    %v76 = vlaneseq
    %v77 = vshrl.u32 %v76, 7
    %v78 = vsub.s32 0, %v77
    %v79 = vrot.slane %v74, %v78
    %81 = vmatprep.subr.mxu0 0.0
    %82 = vmatpush1.msra.mxu0 %v58
    %83 = vmatprep.subr.mxu0 0.0
    %84 = vmatpush1.msra.mxu0 %v59
    %85 = vmatprep.subr.mxu0 0.0
    %86 = vmatpush1.msra.mxu0 %v60
    %87 = vmatprep.subr.mxu0 0.0
    %88 = vmatpush1.msra.mxu0 %v61
    %89 = vmatprep.subr.mxu0 0.0
    %90 = vmatpush1.msra.mxu0 %v62
    %91 = vmatprep.subr.mxu0 0.0
    %92 = vmatpush1.msra.mxu0 %v63
    %93 = vmatprep.subr.mxu0 0.0
    %94 = vmatpush1.msra.mxu0 %v64
    %95 = vmatprep.subr.mxu0 0.0
    %96 = vmatpush1.msra.mxu0 %v65
    %97 = vmatprep.subr.mxu0 0.0
    %98 = vmatpush1.msra.mxu0 %v66
    %99 = vmatprep.subr.mxu0 0.0
    %100 = vmatpush1.msra.mxu0 %v67
    %101 = vmatprep.subr.mxu0 0.0
    %102 = vmatpush1.msra.mxu0 %v68
    %103 = vmatprep.subr.mxu0 0.0
    %104 = vmatpush1.msra.mxu0 %v69
    %105 = vmatprep.subr.mxu0 0.0
    %106 = vmatpush1.msra.mxu0 %v70
    %107 = vmatprep.subr.mxu0 0.0
    %108 = vmatpush1.msra.mxu0 %v71
    %109 = vmatprep.subr.mxu0 0.0
    %110 = vmatpush1.msra.mxu0 %v72
    %111 = vmatprep.subr.mxu0 0.0
    %112 = vmatpush1.msra.mxu0 %v73
    %113 = vmatprep.subr.mxu0 0.0
    %114 = vmatpush1.msra.mxu0 0.0
    %115 = vmatprep.subr.mxu0 0.0
    %116 = vmatpush1.msra.mxu0 0.0
    %117 = vmatprep.subr.mxu0 0.0
    %118 = vmatpush1.msra.mxu0 0.0
    %119 = vmatprep.subr.mxu0 0.0
    %120 = vmatpush1.msra.mxu0 0.0
    %121 = vmatprep.subr.mxu0 0.0
    %122 = vmatpush1.msra.mxu0 0.0
    %123 = vmatprep.subr.mxu0 0.0
    %124 = vmatpush1.msra.mxu0 0.0
    %125 = vmatprep.subr.mxu0 0.0
    %126 = vmatpush1.msra.mxu0 0.0
    %127 = vmatprep.subr.mxu0 0.0
    %128 = vmatpush1.msra.mxu0 0.0
    %129 = vmatprep.subr.mxu0 0.0
    %130 = vmatpush1.msra.mxu0 0.0
    %131 = vmatprep.subr.mxu0 0.0
    %132 = vmatpush1.msra.mxu0 0.0
    %133 = vmatprep.subr.mxu0 0.0
    %134 = vmatpush1.msra.mxu0 0.0
    %135 = vmatprep.subr.mxu0 0.0
    %136 = vmatpush1.msra.mxu0 0.0
    %137 = vmatprep.subr.mxu0 0.0
    %138 = vmatpush1.msra.mxu0 0.0
    %139 = vmatprep.subr.mxu0 0.0
    %140 = vmatpush1.msra.mxu0 0.0
    %141 = vmatprep.subr.mxu0 0.0
    %142 = vmatpush1.msra.mxu0 0.0
    %143 = vmatprep.subr.mxu0 0.0
    %144 = vmatpush1.msra.mxu0 0.0
    %145 = vmatprep.mubr.f32.mxu0 0.0
    %146 = vmatmul.mubr.f32.gmra.mrb[0].mxu0 %v42
    %v147 = vpop.f32.mrb[0].mxu0
    %v148 = vadd.f32 %v79, %v147
    %v149 = vpop.f32.mrb[0].mxu0
    %150 = vmatprep.mubr.f32.mxu0 0.0
    %151 = vmatmul.mubr.f32.gmra.mrb[0].mxu0 %v43
    %v152 = vpop.f32.mrb[0].mxu0
    %v153 = vadd.f32 %v79, %v152
    %v154 = vpop.f32.mrb[0].mxu0
    %155 = vmatprep.mubr.f32.mxu0 0.0
    %156 = vmatmul.mubr.f32.gmra.mrb[0].mxu0 %v44
    %v157 = vpop.f32.mrb[0].mxu0
    %v158 = vadd.f32 %v79, %v157
    %v159 = vpop.f32.mrb[0].mxu0
    %160 = vmatprep.mubr.f32.mxu0 0.0
    %161 = vmatmul.mubr.f32.gmra.mrb[0].mxu0 %v45
    %v162 = vpop.f32.mrb[0].mxu0
    %v163 = vadd.f32 %v79, %v162
    %v164 = vpop.f32.mrb[0].mxu0
    %165 = vmatprep.mubr.f32.mxu0 0.0
    %166 = vmatmul.mubr.f32.gmra.mrb[0].mxu0 %v46
    %v167 = vpop.f32.mrb[0].mxu0
    %v168 = vadd.f32 %v79, %v167
    %v169 = vpop.f32.mrb[0].mxu0
    %170 = vmatprep.mubr.f32.mxu0 0.0
    %171 = vmatmul.mubr.f32.gmra.mrb[0].mxu0 %v47
    %v172 = vpop.f32.mrb[0].mxu0
    %v173 = vadd.f32 %v79, %v172
    %v174 = vpop.f32.mrb[0].mxu0
    %175 = vmatprep.mubr.f32.mxu0 0.0
    %176 = vmatmul.mubr.f32.gmra.mrb[0].mxu0 %v48
    %v177 = vpop.f32.mrb[0].mxu0
    %v178 = vadd.f32 %v79, %v177
    %v179 = vpop.f32.mrb[0].mxu0
    %180 = vmatprep.mubr.f32.mxu0 0.0
    %181 = vmatmul.mubr.f32.gmra.mrb[0].mxu0 %v49
    %v182 = vpop.f32.mrb[0].mxu0
    %v183 = vadd.f32 %v79, %v182
    %v184 = vpop.f32.mrb[0].mxu0
    %185 = vmatprep.mubr.f32.mxu0 0.0
    %186 = vmatmul.mubr.f32.gmra.mrb[0].mxu0 %v50
    %v187 = vpop.f32.mrb[0].mxu0
    %v188 = vadd.f32 %v79, %v187
    %v189 = vpop.f32.mrb[0].mxu0
    %190 = vmatprep.mubr.f32.mxu0 0.0
    %191 = vmatmul.mubr.f32.gmra.mrb[0].mxu0 %v51
    %v192 = vpop.f32.mrb[0].mxu0
    %v193 = vadd.f32 %v79, %v192
    %v194 = vpop.f32.mrb[0].mxu0
    %195 = vmatprep.mubr.f32.mxu0 0.0
    %196 = vmatmul.mubr.f32.gmra.mrb[0].mxu0 %v52
    %v197 = vpop.f32.mrb[0].mxu0
    %v198 = vadd.f32 %v79, %v197
    %v199 = vpop.f32.mrb[0].mxu0
    %200 = vmatprep.mubr.f32.mxu0 0.0
    %201 = vmatmul.mubr.f32.gmra.mrb[0].mxu0 %v53
    %v202 = vpop.f32.mrb[0].mxu0
    %v203 = vadd.f32 %v79, %v202
    %v204 = vpop.f32.mrb[0].mxu0
    %205 = vmatprep.mubr.f32.mxu0 0.0
    %206 = vmatmul.mubr.f32.gmra.mrb[0].mxu0 %v54
    %v207 = vpop.f32.mrb[0].mxu0
    %v208 = vadd.f32 %v79, %v207
    %v209 = vpop.f32.mrb[0].mxu0
    %210 = vmatprep.mubr.f32.mxu0 0.0
    %211 = vmatmul.mubr.f32.gmra.mrb[0].mxu0 %v55
    %v212 = vpop.f32.mrb[0].mxu0
    %v213 = vadd.f32 %v79, %v212
    %v214 = vpop.f32.mrb[0].mxu0
    %215 = vmatprep.mubr.f32.mxu0 0.0
    %216 = vmatmul.mubr.f32.gmra.mrb[0].mxu0 %v56
    %v217 = vpop.f32.mrb[0].mxu0
    %v218 = vadd.f32 %v79, %v217
    %v219 = vpop.f32.mrb[0].mxu0
    %220 = vmatprep.mubr.f32.mxu0 0.0
    %221 = vmatmul.mubr.f32.gmra.mrb[0].mxu0 %v57
    %v222 = vpop.f32.mrb[0].mxu0
    %v223 = vadd.f32 %v79, %v222
    %v224 = vpop.f32.mrb[0].mxu0
    %225 = vdwg.mxu0
    %v226 = vtanh.pop %v148
    %v227 = vtanh.pop %v153
    %v228 = vtanh.pop %v158
    %v229 = vtanh.pop %v163
    %v230 = vtanh.pop %v168
    %v231 = vtanh.pop %v173
    %v232 = vtanh.pop %v178
    %v233 = vtanh.pop %v183
    %v234 = vtanh.pop %v188
    %v235 = vtanh.pop %v193
    %v236 = vtanh.pop %v198
    %v237 = vtanh.pop %v203
    %v238 = vtanh.pop %v208
    %v239 = vtanh.pop %v213
    %v240 = vtanh.pop %v218
    %v241 = vtanh.pop %v223
    %v242 = vld [vmem:[%s3] sm:$0xff]
    %v243 = vld [vmem:[%s3 + $0x8] sm:$0xff]
    %v244 = vld [vmem:[%s3 + $0x10] sm:$0xff]
    %v245 = vld [vmem:[%s3 + $0x18] sm:$0xff]
    %v246 = vld [vmem:[%s3 + $0x20] sm:$0xff]
    %v247 = vld [vmem:[%s3 + $0x28] sm:$0xff]
    %v248 = vld [vmem:[%s3 + $0x30] sm:$0xff]
    %v249 = vld [vmem:[%s3 + $0x38] sm:$0xff]
    %v250 = vld [vmem:[%s3 + $0x40] sm:$0xff]
    %v251 = vld [vmem:[%s3 + $0x48] sm:$0xff]
    %v252 = vld [vmem:[%s3 + $0x50] sm:$0xff]
    %v253 = vld [vmem:[%s3 + $0x58] sm:$0xff]
    %v254 = vld [vmem:[%s3 + $0x60] sm:$0xff]
    %v255 = vld [vmem:[%s3 + $0x68] sm:$0xff]
    %v256 = vld [vmem:[%s3 + $0x70] sm:$0xff]
    %v257 = vld [vmem:[%s3 + $0x78] sm:$0xff]
    %258 = vmatprep.subr.mxu0 0.0
    %259 = vmatpush1.msra.mxu0 %v242
    %260 = vmatprep.subr.mxu0 0.0
    %261 = vmatpush1.msra.mxu0 %v243
    %262 = vmatprep.subr.mxu0 0.0
    %263 = vmatpush1.msra.mxu0 %v244
    %264 = vmatprep.subr.mxu0 0.0
    %265 = vmatpush1.msra.mxu0 %v245
    %266 = vmatprep.subr.mxu0 0.0
    %267 = vmatpush1.msra.mxu0 %v246
    %268 = vmatprep.subr.mxu0 0.0
    %269 = vmatpush1.msra.mxu0 %v247
    %270 = vmatprep.subr.mxu0 0.0
    %271 = vmatpush1.msra.mxu0 %v248
    %272 = vmatprep.subr.mxu0 0.0
    %273 = vmatpush1.msra.mxu0 %v249
    %274 = vmatprep.subr.mxu0 0.0
    %275 = vmatpush1.msra.mxu0 %v250
    %276 = vmatprep.subr.mxu0 0.0
    %277 = vmatpush1.msra.mxu0 %v251
    %278 = vmatprep.subr.mxu0 0.0
    %279 = vmatpush1.msra.mxu0 %v252
    %280 = vmatprep.subr.mxu0 0.0
    %281 = vmatpush1.msra.mxu0 %v253
    %282 = vmatprep.subr.mxu0 0.0
    %283 = vmatpush1.msra.mxu0 %v254
    %284 = vmatprep.subr.mxu0 0.0
    %285 = vmatpush1.msra.mxu0 %v255
    %286 = vmatprep.subr.mxu0 0.0
    %287 = vmatpush1.msra.mxu0 %v256
    %288 = vmatprep.subr.mxu0 0.0
    %289 = vmatpush1.msra.mxu0 %v257
    %290 = vmatprep.subr.mxu0 0.0
    %291 = vmatpush1.msra.mxu0 0.0
    %292 = vmatprep.subr.mxu0 0.0
    %293 = vmatpush1.msra.mxu0 0.0
    %294 = vmatprep.subr.mxu0 0.0
    %295 = vmatpush1.msra.mxu0 0.0
    %296 = vmatprep.subr.mxu0 0.0
    %297 = vmatpush1.msra.mxu0 0.0
    %298 = vmatprep.subr.mxu0 0.0
    %299 = vmatpush1.msra.mxu0 0.0
    %300 = vmatprep.subr.mxu0 0.0
    %301 = vmatpush1.msra.mxu0 0.0
    %302 = vmatprep.subr.mxu0 0.0
    %303 = vmatpush1.msra.mxu0 0.0
    %304 = vmatprep.subr.mxu0 0.0
    %305 = vmatpush1.msra.mxu0 0.0
    %306 = vmatprep.subr.mxu0 0.0
    %307 = vmatpush1.msra.mxu0 0.0
    %308 = vmatprep.subr.mxu0 0.0
    %309 = vmatpush1.msra.mxu0 0.0
    %310 = vmatprep.subr.mxu0 0.0
    %311 = vmatpush1.msra.mxu0 0.0
    %312 = vmatprep.subr.mxu0 0.0
    %313 = vmatpush1.msra.mxu0 0.0
    %314 = vmatprep.subr.mxu0 0.0
    %315 = vmatpush1.msra.mxu0 0.0
    %316 = vmatprep.subr.mxu0 0.0
    %317 = vmatpush1.msra.mxu0 0.0
    %318 = vmatprep.subr.mxu0 0.0
    %319 = vmatpush1.msra.mxu0 0.0
    %320 = vmatprep.subr.mxu0 0.0
    %321 = vmatpush1.msra.mxu0 0.0
    %322 = vmatprep.mubr.f32.mxu0 0.0
    %323 = vmatmul.mubr.f32.gmra.mrb[0].mxu0 %v226
    %v324 = vpop.f32.mrb[0].mxu0
    %v325 = vadd.f32 0.0, %v324
    %v326 = vpop.f32.mrb[0].mxu0
    %327 = vmatprep.mubr.f32.mxu0 0.0
    %328 = vmatmul.mubr.f32.gmra.mrb[0].mxu0 %v227
    %v329 = vpop.f32.mrb[0].mxu0
    %v330 = vadd.f32 0.0, %v329
    %v331 = vpop.f32.mrb[0].mxu0
    %332 = vmatprep.mubr.f32.mxu0 0.0
    %333 = vmatmul.mubr.f32.gmra.mrb[0].mxu0 %v228
    %v334 = vpop.f32.mrb[0].mxu0
    %v335 = vadd.f32 0.0, %v334
    %v336 = vpop.f32.mrb[0].mxu0
    %337 = vmatprep.mubr.f32.mxu0 0.0
    %338 = vmatmul.mubr.f32.gmra.mrb[0].mxu0 %v229
    %v339 = vpop.f32.mrb[0].mxu0
    %v340 = vadd.f32 0.0, %v339
    %v341 = vpop.f32.mrb[0].mxu0
    %342 = vmatprep.mubr.f32.mxu0 0.0
    %343 = vmatmul.mubr.f32.gmra.mrb[0].mxu0 %v230
    %v344 = vpop.f32.mrb[0].mxu0
    %v345 = vadd.f32 0.0, %v344
    %v346 = vpop.f32.mrb[0].mxu0
    %347 = vmatprep.mubr.f32.mxu0 0.0
    %348 = vmatmul.mubr.f32.gmra.mrb[0].mxu0 %v231
    %v349 = vpop.f32.mrb[0].mxu0
    %v350 = vadd.f32 0.0, %v349
    %v351 = vpop.f32.mrb[0].mxu0
    %352 = vmatprep.mubr.f32.mxu0 0.0
    %353 = vmatmul.mubr.f32.gmra.mrb[0].mxu0 %v232
    %v354 = vpop.f32.mrb[0].mxu0
    %v355 = vadd.f32 0.0, %v354
    %v356 = vpop.f32.mrb[0].mxu0
    %357 = vmatprep.mubr.f32.mxu0 0.0
    %358 = vmatmul.mubr.f32.gmra.mrb[0].mxu0 %v233
    %v359 = vpop.f32.mrb[0].mxu0
    %v360 = vadd.f32 0.0, %v359
    %v361 = vpop.f32.mrb[0].mxu0
    %362 = vmatprep.mubr.f32.mxu0 0.0
    %363 = vmatmul.mubr.f32.gmra.mrb[0].mxu0 %v234
    %v364 = vpop.f32.mrb[0].mxu0
    %v365 = vadd.f32 0.0, %v364
    %v366 = vpop.f32.mrb[0].mxu0
    %367 = vmatprep.mubr.f32.mxu0 0.0
    %368 = vmatmul.mubr.f32.gmra.mrb[0].mxu0 %v235
    %v369 = vpop.f32.mrb[0].mxu0
    %v370 = vadd.f32 0.0, %v369
    %v371 = vpop.f32.mrb[0].mxu0
    %372 = vmatprep.mubr.f32.mxu0 0.0
    %373 = vmatmul.mubr.f32.gmra.mrb[0].mxu0 %v236
    %v374 = vpop.f32.mrb[0].mxu0
    %v375 = vadd.f32 0.0, %v374
    %v376 = vpop.f32.mrb[0].mxu0
    %377 = vmatprep.mubr.f32.mxu0 0.0
    %378 = vmatmul.mubr.f32.gmra.mrb[0].mxu0 %v237
    %v379 = vpop.f32.mrb[0].mxu0
    %v380 = vadd.f32 0.0, %v379
    %v381 = vpop.f32.mrb[0].mxu0
    %382 = vmatprep.mubr.f32.mxu0 0.0
    %383 = vmatmul.mubr.f32.gmra.mrb[0].mxu0 %v238
    %v384 = vpop.f32.mrb[0].mxu0
    %v385 = vadd.f32 0.0, %v384
    %v386 = vpop.f32.mrb[0].mxu0
    %387 = vmatprep.mubr.f32.mxu0 0.0
    %388 = vmatmul.mubr.f32.gmra.mrb[0].mxu0 %v239
    %v389 = vpop.f32.mrb[0].mxu0
    %v390 = vadd.f32 0.0, %v389
    %v391 = vpop.f32.mrb[0].mxu0
    %392 = vmatprep.mubr.f32.mxu0 0.0
    %393 = vmatmul.mubr.f32.gmra.mrb[0].mxu0 %v240
    %v394 = vpop.f32.mrb[0].mxu0
    %v395 = vadd.f32 0.0, %v394
    %v396 = vpop.f32.mrb[0].mxu0
    %397 = vmatprep.mubr.f32.mxu0 0.0
    %398 = vmatmul.mubr.f32.gmra.mrb[0].mxu0 %v241
    %v399 = vpop.f32.mrb[0].mxu0
    %v400 = vadd.f32 0.0, %v399
    %v401 = vpop.f32.mrb[0].mxu0
    %402 = vdwg.mxu0
    %vm403 = vcmask 64512
    %v404 = vsel %vm403, %v325, -inf
    %405 = vmax.xlane.f32.xlu0 %v404
    %v406 = vpop.xlane.xlu0 %405
    %v407 = vsel %vm403, %v330, -inf
    %408 = vmax.xlane.f32.xlu0 %v407
    %v409 = vpop.xlane.xlu0 %408
    %v410 = vsel %vm403, %v335, -inf
    %411 = vmax.xlane.f32.xlu0 %v410
    %v412 = vpop.xlane.xlu0 %411
    %v413 = vsel %vm403, %v340, -inf
    %414 = vmax.xlane.f32.xlu0 %v413
    %v415 = vpop.xlane.xlu0 %414
    %v416 = vsel %vm403, %v345, -inf
    %417 = vmax.xlane.f32.xlu0 %v416
    %v418 = vpop.xlane.xlu0 %417
    %v419 = vsel %vm403, %v350, -inf
    %420 = vmax.xlane.f32.xlu0 %v419
    %v421 = vpop.xlane.xlu0 %420
    %v422 = vsel %vm403, %v355, -inf
    %423 = vmax.xlane.f32.xlu0 %v422
    %v424 = vpop.xlane.xlu0 %423
    %v425 = vsel %vm403, %v360, -inf
    %426 = vmax.xlane.f32.xlu0 %v425
    %v427 = vpop.xlane.xlu0 %426
    %v428 = vsel %vm403, %v365, -inf
    %429 = vmax.xlane.f32.xlu0 %v428
    %v430 = vpop.xlane.xlu0 %429
    %v431 = vsel %vm403, %v370, -inf
    %432 = vmax.xlane.f32.xlu0 %v431
    %v433 = vpop.xlane.xlu0 %432
    %v434 = vsel %vm403, %v375, -inf
    %435 = vmax.xlane.f32.xlu0 %v434
    %v436 = vpop.xlane.xlu0 %435
    %v437 = vsel %vm403, %v380, -inf
    %438 = vmax.xlane.f32.xlu0 %v437
    %v439 = vpop.xlane.xlu0 %438
    %v440 = vsel %vm403, %v385, -inf
    %441 = vmax.xlane.f32.xlu0 %v440
    %v442 = vpop.xlane.xlu0 %441
    %v443 = vsel %vm403, %v390, -inf
    %444 = vmax.xlane.f32.xlu0 %v443
    %v445 = vpop.xlane.xlu0 %444
    %v446 = vsel %vm403, %v395, -inf
    %447 = vmax.xlane.f32.xlu0 %v446
    %v448 = vpop.xlane.xlu0 %447
    %v449 = vsel %vm403, %v400, -inf
    %450 = vmax.xlane.f32.xlu0 %v449
    %v451 = vpop.xlane.xlu0 %450
    %v452 = vsub.f32 %v325, %v406
    %v453 = vsub.f32 %v330, %v409
    %v454 = vsub.f32 %v335, %v412
    %v455 = vsub.f32 %v340, %v415
    %v456 = vsub.f32 %v345, %v418
    %v457 = vsub.f32 %v350, %v421
    %v458 = vsub.f32 %v355, %v424
    %v459 = vsub.f32 %v360, %v427
    %v460 = vsub.f32 %v365, %v430
    %v461 = vsub.f32 %v370, %v433
    %v462 = vsub.f32 %v375, %v436
    %v463 = vsub.f32 %v380, %v439
    %v464 = vsub.f32 %v385, %v442
    %v465 = vsub.f32 %v390, %v445
    %v466 = vsub.f32 %v395, %v448
    %v467 = vsub.f32 %v400, %v451
    %v468 = vmul.f32 %v452, 1.442695
    %v469 = vpow.pop %v468
    %v470 = vmul.f32 %v453, 1.442695
    %v471 = vpow.pop %v470
    %v472 = vmul.f32 %v454, 1.442695
    %v473 = vpow.pop %v472
    %v474 = vmul.f32 %v455, 1.442695
    %v475 = vpow.pop %v474
    %v476 = vmul.f32 %v456, 1.442695
    %v477 = vpow.pop %v476
    %v478 = vmul.f32 %v457, 1.442695
    %v479 = vpow.pop %v478
    %v480 = vmul.f32 %v458, 1.442695
    %v481 = vpow.pop %v480
    %v482 = vmul.f32 %v459, 1.442695
    %v483 = vpow.pop %v482
    %v484 = vmul.f32 %v460, 1.442695
    %v485 = vpow.pop %v484
    %v486 = vmul.f32 %v461, 1.442695
    %v487 = vpow.pop %v486
    %v488 = vmul.f32 %v462, 1.442695
    %v489 = vpow.pop %v488
    %v490 = vmul.f32 %v463, 1.442695
    %v491 = vpow.pop %v490
    %v492 = vmul.f32 %v464, 1.442695
    %v493 = vpow.pop %v492
    %v494 = vmul.f32 %v465, 1.442695
    %v495 = vpow.pop %v494
    %v496 = vmul.f32 %v466, 1.442695
    %v497 = vpow.pop %v496
    %v498 = vmul.f32 %v467, 1.442695
    %v499 = vpow.pop %v498
    %v500 = vsel %vm403, %v469, 0.0
    %501 = vadd.xlane.f32.xlu0 %v500
    %v502 = vpop.xlane.xlu0 %501
    %v503 = vsel %vm403, %v471, 0.0
    %504 = vadd.xlane.f32.xlu0 %v503
    %v505 = vpop.xlane.xlu0 %504
    %v506 = vsel %vm403, %v473, 0.0
    %507 = vadd.xlane.f32.xlu0 %v506
    %v508 = vpop.xlane.xlu0 %507
    %v509 = vsel %vm403, %v475, 0.0
    %510 = vadd.xlane.f32.xlu0 %v509
    %v511 = vpop.xlane.xlu0 %510
    %v512 = vsel %vm403, %v477, 0.0
    %513 = vadd.xlane.f32.xlu0 %v512
    %v514 = vpop.xlane.xlu0 %513
    %v515 = vsel %vm403, %v479, 0.0
    %516 = vadd.xlane.f32.xlu0 %v515
    %v517 = vpop.xlane.xlu0 %516
    %v518 = vsel %vm403, %v481, 0.0
    %519 = vadd.xlane.f32.xlu0 %v518
    %v520 = vpop.xlane.xlu0 %519
    %v521 = vsel %vm403, %v483, 0.0
    %522 = vadd.xlane.f32.xlu0 %v521
    %v523 = vpop.xlane.xlu0 %522
    %v524 = vsel %vm403, %v485, 0.0
    %525 = vadd.xlane.f32.xlu0 %v524
    %v526 = vpop.xlane.xlu0 %525
    %v527 = vsel %vm403, %v487, 0.0
    %528 = vadd.xlane.f32.xlu0 %v527
    %v529 = vpop.xlane.xlu0 %528
    %v530 = vsel %vm403, %v489, 0.0
    %531 = vadd.xlane.f32.xlu0 %v530
    %v532 = vpop.xlane.xlu0 %531
    %v533 = vsel %vm403, %v491, 0.0
    %534 = vadd.xlane.f32.xlu0 %v533
    %v535 = vpop.xlane.xlu0 %534
    %v536 = vsel %vm403, %v493, 0.0
    %537 = vadd.xlane.f32.xlu0 %v536
    %v538 = vpop.xlane.xlu0 %537
    %v539 = vsel %vm403, %v495, 0.0
    %540 = vadd.xlane.f32.xlu0 %v539
    %v541 = vpop.xlane.xlu0 %540
    %v542 = vsel %vm403, %v497, 0.0
    %543 = vadd.xlane.f32.xlu0 %v542
    %v544 = vpop.xlane.xlu0 %543
    %v545 = vsel %vm403, %v499, 0.0
    %546 = vadd.xlane.f32.xlu0 %v545
    %v547 = vpop.xlane.xlu0 %546
    %v548 = vrcp.pop %v502
    %v549 = vmul.f32 %v469, %v548
    %v550 = vrcp.pop %v505
    %v551 = vmul.f32 %v471, %v550
    %v552 = vrcp.pop %v508
    %v553 = vmul.f32 %v473, %v552
    %v554 = vrcp.pop %v511
    %v555 = vmul.f32 %v475, %v554
    %v556 = vrcp.pop %v514
    %v557 = vmul.f32 %v477, %v556
    %v558 = vrcp.pop %v517
    %v559 = vmul.f32 %v479, %v558
    %v560 = vrcp.pop %v520
    %v561 = vmul.f32 %v481, %v560
    %v562 = vrcp.pop %v523
    %v563 = vmul.f32 %v483, %v562
    %v564 = vrcp.pop %v526
    %v565 = vmul.f32 %v485, %v564
    %v566 = vrcp.pop %v529
    %v567 = vmul.f32 %v487, %v566
    %v568 = vrcp.pop %v532
    %v569 = vmul.f32 %v489, %v568
    %v570 = vrcp.pop %v535
    %v571 = vmul.f32 %v491, %v570
    %v572 = vrcp.pop %v538
    %v573 = vmul.f32 %v493, %v572
    %v574 = vrcp.pop %v541
    %v575 = vmul.f32 %v495, %v574
    %v576 = vrcp.pop %v544
    %v577 = vmul.f32 %v497, %v576
    %v578 = vrcp.pop %v547
    %v579 = vmul.f32 %v499, %v578
    %v580 = vld [vmem:[%s4] sm:$0xff]
    %v582 = vsel %vm403, %v549, 0
    %v585 = vsel %vm403, %v551, 0
    %v588 = vsel %vm403, %v553, 0
    %v591 = vsel %vm403, %v555, 0
    %v594 = vsel %vm403, %v557, 0
    %v597 = vsel %vm403, %v559, 0
    %v600 = vsel %vm403, %v561, 0
    %v603 = vsel %vm403, %v563, 0
    %v606 = vsel %vm403, %v565, 0
    %v609 = vsel %vm403, %v567, 0
    %v612 = vsel %vm403, %v569, 0
    %v615 = vsel %vm403, %v571, 0
    %v618 = vsel %vm403, %v573, 0
    %v621 = vsel %vm403, %v575, 0
    %v624 = vsel %vm403, %v577, 0
    %v627 = vsel %vm403, %v579, 0
    %629 = vmatprep.subr.mxu0 0.0
    %630 = vmatpush1.msra.mxu0 %v580
    %631 = vmatprep.subr.mxu0 0.0
    %632 = vmatpush1.msra.mxu0 0.0
    %633 = vmatprep.subr.mxu0 0.0
    %634 = vmatpush1.msra.mxu0 0.0
    %635 = vmatprep.subr.mxu0 0.0
    %636 = vmatpush1.msra.mxu0 0.0
    %637 = vmatprep.subr.mxu0 0.0
    %638 = vmatpush1.msra.mxu0 0.0
    %639 = vmatprep.subr.mxu0 0.0
    %640 = vmatpush1.msra.mxu0 0.0
    %641 = vmatprep.subr.mxu0 0.0
    %642 = vmatpush1.msra.mxu0 0.0
    %643 = vmatprep.subr.mxu0 0.0
    %644 = vmatpush1.msra.mxu0 0.0
    %645 = vmatprep.subr.mxu0 0.0
    %646 = vmatpush1.msra.mxu0 0.0
    %647 = vmatprep.subr.mxu0 0.0
    %648 = vmatpush1.msra.mxu0 0.0
    %649 = vmatprep.subr.mxu0 0.0
    %650 = vmatpush1.msra.mxu0 0.0
    %651 = vmatprep.subr.mxu0 0.0
    %652 = vmatpush1.msra.mxu0 0.0
    %653 = vmatprep.subr.mxu0 0.0
    %654 = vmatpush1.msra.mxu0 0.0
    %655 = vmatprep.subr.mxu0 0.0
    %656 = vmatpush1.msra.mxu0 0.0
    %657 = vmatprep.subr.mxu0 0.0
    %658 = vmatpush1.msra.mxu0 0.0
    %659 = vmatprep.subr.mxu0 0.0
    %660 = vmatpush1.msra.mxu0 0.0
    %661 = vmatprep.subr.mxu0 0.0
    %662 = vmatpush1.msra.mxu0 0.0
    %663 = vmatprep.subr.mxu0 0.0
    %664 = vmatpush1.msra.mxu0 0.0
    %665 = vmatprep.subr.mxu0 0.0
    %666 = vmatpush1.msra.mxu0 0.0
    %667 = vmatprep.subr.mxu0 0.0
    %668 = vmatpush1.msra.mxu0 0.0
    %669 = vmatprep.subr.mxu0 0.0
    %670 = vmatpush1.msra.mxu0 0.0
    %671 = vmatprep.subr.mxu0 0.0
    %672 = vmatpush1.msra.mxu0 0.0
    %673 = vmatprep.subr.mxu0 0.0
    %674 = vmatpush1.msra.mxu0 0.0
    %675 = vmatprep.subr.mxu0 0.0
    %676 = vmatpush1.msra.mxu0 0.0
    %677 = vmatprep.subr.mxu0 0.0
    %678 = vmatpush1.msra.mxu0 0.0
    %679 = vmatprep.subr.mxu0 0.0
    %680 = vmatpush1.msra.mxu0 0.0
    %681 = vmatprep.subr.mxu0 0.0
    %682 = vmatpush1.msra.mxu0 0.0
    %683 = vmatprep.subr.mxu0 0.0
    %684 = vmatpush1.msra.mxu0 0.0
    %685 = vmatprep.subr.mxu0 0.0
    %686 = vmatpush1.msra.mxu0 0.0
    %687 = vmatprep.subr.mxu0 0.0
    %688 = vmatpush1.msra.mxu0 0.0
    %689 = vmatprep.subr.mxu0 0.0
    %690 = vmatpush1.msra.mxu0 0.0
    %691 = vmatprep.subr.mxu0 0.0
    %692 = vmatpush1.msra.mxu0 0.0
    %693 = vmatprep.mubr.f32.mxu0 0.0
    %694 = vmatmul.mubr.f32.gmra.mrb[0].mxu0 %v582
    %v695 = vpop.f32.mrb[0].mxu0
    %v696 = vadd.f32 0.0, %v695
    %v697 = vpop.f32.mrb[0].mxu0
    %698 = vmatprep.mubr.f32.mxu0 0.0
    %699 = vmatmul.mubr.f32.gmra.mrb[0].mxu0 %v585
    %v700 = vpop.f32.mrb[0].mxu0
    %v701 = vadd.f32 0.0, %v700
    %v702 = vpop.f32.mrb[0].mxu0
    %703 = vmatprep.mubr.f32.mxu0 0.0
    %704 = vmatmul.mubr.f32.gmra.mrb[0].mxu0 %v588
    %v705 = vpop.f32.mrb[0].mxu0
    %v706 = vadd.f32 0.0, %v705
    %v707 = vpop.f32.mrb[0].mxu0
    %708 = vmatprep.mubr.f32.mxu0 0.0
    %709 = vmatmul.mubr.f32.gmra.mrb[0].mxu0 %v591
    %v710 = vpop.f32.mrb[0].mxu0
    %v711 = vadd.f32 0.0, %v710
    %v712 = vpop.f32.mrb[0].mxu0
    %713 = vmatprep.mubr.f32.mxu0 0.0
    %714 = vmatmul.mubr.f32.gmra.mrb[0].mxu0 %v594
    %v715 = vpop.f32.mrb[0].mxu0
    %v716 = vadd.f32 0.0, %v715
    %v717 = vpop.f32.mrb[0].mxu0
    %718 = vmatprep.mubr.f32.mxu0 0.0
    %719 = vmatmul.mubr.f32.gmra.mrb[0].mxu0 %v597
    %v720 = vpop.f32.mrb[0].mxu0
    %v721 = vadd.f32 0.0, %v720
    %v722 = vpop.f32.mrb[0].mxu0
    %723 = vmatprep.mubr.f32.mxu0 0.0
    %724 = vmatmul.mubr.f32.gmra.mrb[0].mxu0 %v600
    %v725 = vpop.f32.mrb[0].mxu0
    %v726 = vadd.f32 0.0, %v725
    %v727 = vpop.f32.mrb[0].mxu0
    %728 = vmatprep.mubr.f32.mxu0 0.0
    %729 = vmatmul.mubr.f32.gmra.mrb[0].mxu0 %v603
    %v730 = vpop.f32.mrb[0].mxu0
    %v731 = vadd.f32 0.0, %v730
    %v732 = vpop.f32.mrb[0].mxu0
    %733 = vmatprep.mubr.f32.mxu0 0.0
    %734 = vmatmul.mubr.f32.gmra.mrb[0].mxu0 %v606
    %v735 = vpop.f32.mrb[0].mxu0
    %v736 = vadd.f32 0.0, %v735
    %v737 = vpop.f32.mrb[0].mxu0
    %738 = vmatprep.mubr.f32.mxu0 0.0
    %739 = vmatmul.mubr.f32.gmra.mrb[0].mxu0 %v609
    %v740 = vpop.f32.mrb[0].mxu0
    %v741 = vadd.f32 0.0, %v740
    %v742 = vpop.f32.mrb[0].mxu0
    %743 = vmatprep.mubr.f32.mxu0 0.0
    %744 = vmatmul.mubr.f32.gmra.mrb[0].mxu0 %v612
    %v745 = vpop.f32.mrb[0].mxu0
    %v746 = vadd.f32 0.0, %v745
    %v747 = vpop.f32.mrb[0].mxu0
    %748 = vmatprep.mubr.f32.mxu0 0.0
    %749 = vmatmul.mubr.f32.gmra.mrb[0].mxu0 %v615
    %v750 = vpop.f32.mrb[0].mxu0
    %v751 = vadd.f32 0.0, %v750
    %v752 = vpop.f32.mrb[0].mxu0
    %753 = vmatprep.mubr.f32.mxu0 0.0
    %754 = vmatmul.mubr.f32.gmra.mrb[0].mxu0 %v618
    %v755 = vpop.f32.mrb[0].mxu0
    %v756 = vadd.f32 0.0, %v755
    %v757 = vpop.f32.mrb[0].mxu0
    %758 = vmatprep.mubr.f32.mxu0 0.0
    %759 = vmatmul.mubr.f32.gmra.mrb[0].mxu0 %v621
    %v760 = vpop.f32.mrb[0].mxu0
    %v761 = vadd.f32 0.0, %v760
    %v762 = vpop.f32.mrb[0].mxu0
    %763 = vmatprep.mubr.f32.mxu0 0.0
    %764 = vmatmul.mubr.f32.gmra.mrb[0].mxu0 %v624
    %v765 = vpop.f32.mrb[0].mxu0
    %v766 = vadd.f32 0.0, %v765
    %v767 = vpop.f32.mrb[0].mxu0
    %768 = vmatprep.mubr.f32.mxu0 0.0
    %769 = vmatmul.mubr.f32.gmra.mrb[0].mxu0 %v627
    %v770 = vpop.f32.mrb[0].mxu0
    %v771 = vadd.f32 0.0, %v770
    %v772 = vpop.f32.mrb[0].mxu0
    %773 = vdwg.mxu0
    %v774 = vmul.f32 %v226, %v696
    %v775 = vmul.f32 %v227, %v701
    %v776 = vmul.f32 %v228, %v706
    %v777 = vmul.f32 %v229, %v711
    %v778 = vmul.f32 %v230, %v716
    %v779 = vmul.f32 %v231, %v721
    %v780 = vmul.f32 %v232, %v726
    %v781 = vmul.f32 %v233, %v731
    %v782 = vmul.f32 %v234, %v736
    %v783 = vmul.f32 %v235, %v741
    %v784 = vmul.f32 %v236, %v746
    %v785 = vmul.f32 %v237, %v751
    %v786 = vmul.f32 %v238, %v756
    %v787 = vmul.f32 %v239, %v761
    %v788 = vmul.f32 %v240, %v766
    %v789 = vmul.f32 %v241, %v771
    %v790 = vld [vmem:[%s5] sm:$0xff]
    %v791 = vld [vmem:[%s5 + $0x8] sm:$0xff]
    %792 = vmatprep.subr.mxu0 0.0
    %793 = vmatpush1.xpose.msra.mxu0 %v774
    %794 = vmatprep.subr.mxu0 0.0
    %795 = vmatpush1.xpose.msra.mxu0 %v775
    %796 = vmatprep.subr.mxu0 0.0
    %797 = vmatpush1.xpose.msra.mxu0 %v776
    %798 = vmatprep.subr.mxu0 0.0
    %799 = vmatpush1.xpose.msra.mxu0 %v777
    %800 = vmatprep.subr.mxu0 0.0
    %801 = vmatpush1.xpose.msra.mxu0 %v778
    %802 = vmatprep.subr.mxu0 0.0
    %803 = vmatpush1.xpose.msra.mxu0 %v779
    %804 = vmatprep.subr.mxu0 0.0
    %805 = vmatpush1.xpose.msra.mxu0 %v780
    %806 = vmatprep.subr.mxu0 0.0
    %807 = vmatpush1.xpose.msra.mxu0 %v781
    %808 = vmatprep.subr.mxu0 0.0
    %809 = vmatpush1.xpose.msra.mxu0 %v782
    %810 = vmatprep.subr.mxu0 0.0
    %811 = vmatpush1.xpose.msra.mxu0 %v783
    %812 = vmatprep.subr.mxu0 0.0
    %813 = vmatpush1.xpose.msra.mxu0 %v784
    %814 = vmatprep.subr.mxu0 0.0
    %815 = vmatpush1.xpose.msra.mxu0 %v785
    %816 = vmatprep.subr.mxu0 0.0
    %817 = vmatpush1.xpose.msra.mxu0 %v786
    %818 = vmatprep.subr.mxu0 0.0
    %819 = vmatpush1.xpose.msra.mxu0 %v787
    %820 = vmatprep.subr.mxu0 0.0
    %821 = vmatpush1.xpose.msra.mxu0 %v788
    %822 = vmatprep.subr.mxu0 0.0
    %823 = vmatpush1.xpose.msra.mxu0 %v789
    %824 = vmatprep.subr.mxu0 0.0
    %825 = vmatpush1.xpose.msra.mxu0 0.0
    %826 = vmatprep.subr.mxu0 0.0
    %827 = vmatpush1.xpose.msra.mxu0 0.0
    %828 = vmatprep.subr.mxu0 0.0
    %829 = vmatpush1.xpose.msra.mxu0 0.0
    %830 = vmatprep.subr.mxu0 0.0
    %831 = vmatpush1.xpose.msra.mxu0 0.0
    %832 = vmatprep.subr.mxu0 0.0
    %833 = vmatpush1.xpose.msra.mxu0 0.0
    %834 = vmatprep.subr.mxu0 0.0
    %835 = vmatpush1.xpose.msra.mxu0 0.0
    %836 = vmatprep.subr.mxu0 0.0
    %837 = vmatpush1.xpose.msra.mxu0 0.0
    %838 = vmatprep.subr.mxu0 0.0
    %839 = vmatpush1.xpose.msra.mxu0 0.0
    %840 = vmatprep.subr.mxu0 0.0
    %841 = vmatpush1.xpose.msra.mxu0 0.0
    %842 = vmatprep.subr.mxu0 0.0
    %843 = vmatpush1.xpose.msra.mxu0 0.0
    %844 = vmatprep.subr.mxu0 0.0
    %845 = vmatpush1.xpose.msra.mxu0 0.0
    %846 = vmatprep.subr.mxu0 0.0
    %847 = vmatpush1.xpose.msra.mxu0 0.0
    %848 = vmatprep.subr.mxu0 0.0
    %849 = vmatpush1.xpose.msra.mxu0 0.0
    %850 = vmatprep.subr.mxu0 0.0
    %851 = vmatpush1.xpose.msra.mxu0 0.0
    %852 = vmatprep.subr.mxu0 0.0
    %853 = vmatpush1.xpose.msra.mxu0 0.0
    %854 = vmatprep.subr.mxu0 0.0
    %855 = vmatpush1.xpose.msra.mxu0 0.0
    %856 = vmatprep.mubr.f32.mxu0 0.0
    %857 = vmatmul.mubr.f32.gmra.mrb[0].mxu0 %v790
    %v858 = vpop.f32.mrb[0].mxu0
    %v859 = vadd.f32 0.0, %v858
    %v860 = vpop.f32.mrb[0].mxu0
    %861 = vmatprep.mubr.f32.mxu0 0.0
    %862 = vmatmul.mubr.f32.gmra.mrb[0].mxu0 %v791
    %v863 = vpop.f32.mrb[0].mxu0
    %v864 = vadd.f32 0.0, %v863
    %v865 = vpop.f32.mrb[0].mxu0
    %866 = vdwg.mxu0
    %v867 = vld [vmem:[%s6] sm:$0xff]
    %v868 = vld [vmem:[%s6 + $0x8] sm:$0xff]
    %v869 = vld [vmem:[%s6 + $0x10] sm:$0xff]
    %v870 = vld [vmem:[%s6 + $0x18] sm:$0xff]
    %v871 = vld [vmem:[%s7] sm:$0xff]
    %v872 = vld [vmem:[%s7 + $0x8] sm:$0xff]
    %v873 = vld [vmem:[%s7 + $0x10] sm:$0xff]
    %v874 = vld [vmem:[%s7 + $0x18] sm:$0xff]
    %876 = vset.pattern.permute.xlu0 0
    %877 = vperm.xlu0 %876, %v871
    %v878 = vpop.permute.xlu0 %877
    %881 = vset.pattern.permute.xlu0 0
    %882 = vperm.xlu0 %881, %v872
    %v883 = vpop.permute.xlu0 %882
    %886 = vset.pattern.permute.xlu0 0
    %887 = vperm.xlu0 %886, %v873
    %v888 = vpop.permute.xlu0 %887
    %891 = vset.pattern.permute.xlu0 0
    %892 = vperm.xlu0 %891, %v874
    %v893 = vpop.permute.xlu0 %892
    %vm895 = vcmask 130048
    %v897 = vsel %vm895, %v867, 0
    %v900 = vsel %vm895, %v868, 0
    %v903 = vsel %vm895, %v869, 0
    %v906 = vsel %vm895, %v870, 0
    %908 = vmatprep.subr.mxu0 0.0
    %909 = vmatpush1.msra.mxu0 %v859
    %910 = vmatprep.subr.mxu0 0.0
    %911 = vmatpush1.msra.mxu0 %v864
    %912 = vmatprep.subr.mxu0 0.0
    %913 = vmatpush1.msra.mxu0 0.0
    %914 = vmatprep.subr.mxu0 0.0
    %915 = vmatpush1.msra.mxu0 0.0
    %916 = vmatprep.subr.mxu0 0.0
    %917 = vmatpush1.msra.mxu0 0.0
    %918 = vmatprep.subr.mxu0 0.0
    %919 = vmatpush1.msra.mxu0 0.0
    %920 = vmatprep.subr.mxu0 0.0
    %921 = vmatpush1.msra.mxu0 0.0
    %922 = vmatprep.subr.mxu0 0.0
    %923 = vmatpush1.msra.mxu0 0.0
    %924 = vmatprep.subr.mxu0 0.0
    %925 = vmatpush1.msra.mxu0 0.0
    %926 = vmatprep.subr.mxu0 0.0
    %927 = vmatpush1.msra.mxu0 0.0
    %928 = vmatprep.subr.mxu0 0.0
    %929 = vmatpush1.msra.mxu0 0.0
    %930 = vmatprep.subr.mxu0 0.0
    %931 = vmatpush1.msra.mxu0 0.0
    %932 = vmatprep.subr.mxu0 0.0
    %933 = vmatpush1.msra.mxu0 0.0
    %934 = vmatprep.subr.mxu0 0.0
    %935 = vmatpush1.msra.mxu0 0.0
    %936 = vmatprep.subr.mxu0 0.0
    %937 = vmatpush1.msra.mxu0 0.0
    %938 = vmatprep.subr.mxu0 0.0
    %939 = vmatpush1.msra.mxu0 0.0
    %940 = vmatprep.subr.mxu0 0.0
    %941 = vmatpush1.msra.mxu0 0.0
    %942 = vmatprep.subr.mxu0 0.0
    %943 = vmatpush1.msra.mxu0 0.0
    %944 = vmatprep.subr.mxu0 0.0
    %945 = vmatpush1.msra.mxu0 0.0
    %946 = vmatprep.subr.mxu0 0.0
    %947 = vmatpush1.msra.mxu0 0.0
    %948 = vmatprep.subr.mxu0 0.0
    %949 = vmatpush1.msra.mxu0 0.0
    %950 = vmatprep.subr.mxu0 0.0
    %951 = vmatpush1.msra.mxu0 0.0
    %952 = vmatprep.subr.mxu0 0.0
    %953 = vmatpush1.msra.mxu0 0.0
    %954 = vmatprep.subr.mxu0 0.0
    %955 = vmatpush1.msra.mxu0 0.0
    %956 = vmatprep.subr.mxu0 0.0
    %957 = vmatpush1.msra.mxu0 0.0
    %958 = vmatprep.subr.mxu0 0.0
    %959 = vmatpush1.msra.mxu0 0.0
    %960 = vmatprep.subr.mxu0 0.0
    %961 = vmatpush1.msra.mxu0 0.0
    %962 = vmatprep.subr.mxu0 0.0
    %963 = vmatpush1.msra.mxu0 0.0
    %964 = vmatprep.subr.mxu0 0.0
    %965 = vmatpush1.msra.mxu0 0.0
    %966 = vmatprep.subr.mxu0 0.0
    %967 = vmatpush1.msra.mxu0 0.0
    %968 = vmatprep.subr.mxu0 0.0
    %969 = vmatpush1.msra.mxu0 0.0
    %970 = vmatprep.subr.mxu0 0.0
    %971 = vmatpush1.msra.mxu0 0.0
    %972 = vmatprep.mubr.f32.mxu0 0.0
    %973 = vmatmul.mubr.f32.gmra.mrb[0].mxu0 %v897
    %v974 = vpop.f32.mrb[0].mxu0
    %v975 = vadd.f32 %v878, %v974
    %v976 = vpop.f32.mrb[0].mxu0
    %977 = vmatprep.mubr.f32.mxu0 0.0
    %978 = vmatmul.mubr.f32.gmra.mrb[0].mxu0 %v900
    %v979 = vpop.f32.mrb[0].mxu0
    %v980 = vadd.f32 %v883, %v979
    %v981 = vpop.f32.mrb[0].mxu0
    %982 = vmatprep.mubr.f32.mxu0 0.0
    %983 = vmatmul.mubr.f32.gmra.mrb[0].mxu0 %v903
    %v984 = vpop.f32.mrb[0].mxu0
    %v985 = vadd.f32 %v888, %v984
    %v986 = vpop.f32.mrb[0].mxu0
    %987 = vmatprep.mubr.f32.mxu0 0.0
    %988 = vmatmul.mubr.f32.gmra.mrb[0].mxu0 %v906
    %v989 = vpop.f32.mrb[0].mxu0
    %v990 = vadd.f32 %v893, %v989
    %v991 = vpop.f32.mrb[0].mxu0
    %992 = vdwg.mxu0
    %v993 = vtanh.pop %v975
    %v994 = vtanh.pop %v980
    %v995 = vtanh.pop %v985
    %v996 = vtanh.pop %v990
    %v997 = vld [vmem:[%s8] sm:$0xff]
    %v998 = vld [vmem:[%s8 + $0x8] sm:$0xff]
    %v999 = vld [vmem:[%s8 + $0x10] sm:$0xff]
    %v1000 = vld [vmem:[%s8 + $0x18] sm:$0xff]
    %v1001 = vld [vmem:[%s8 + $0x20] sm:$0xff]
    %v1002 = vld [vmem:[%s8 + $0x28] sm:$0xff]
    %v1003 = vld [vmem:[%s8 + $0x30] sm:$0xff]
    %v1004 = vld [vmem:[%s8 + $0x38] sm:$0xff]
    %v1005 = vld [vmem:[%s8 + $0x40] sm:$0xff]
    %v1006 = vld [vmem:[%s8 + $0x48] sm:$0xff]
    %v1007 = vld [vmem:[%s8 + $0x50] sm:$0xff]
    %v1008 = vld [vmem:[%s8 + $0x58] sm:$0xff]
    %v1009 = vld [vmem:[%s8 + $0x60] sm:$0xff]
    %v1010 = vld [vmem:[%s8 + $0x68] sm:$0xff]
    %v1011 = vld [vmem:[%s8 + $0x70] sm:$0xff]
    %v1012 = vld [vmem:[%s8 + $0x78] sm:$0xff]
    %v1013 = vld [vmem:[%s9] sm:$0xff]
    %v1014 = vld [vmem:[%s9 + $0x8] sm:$0xff]
    %v1015 = vld [vmem:[%s9 + $0x10] sm:$0xff]
    %v1016 = vld [vmem:[%s9 + $0x18] sm:$0xff]
    %v1017 = vld [vmem:[%s9 + $0x20] sm:$0xff]
    %v1018 = vld [vmem:[%s9 + $0x28] sm:$0xff]
    %v1019 = vld [vmem:[%s9 + $0x30] sm:$0xff]
    %v1020 = vld [vmem:[%s9 + $0x38] sm:$0xff]
    %v1021 = vld [vmem:[%s9 + $0x40] sm:$0xff]
    %v1022 = vld [vmem:[%s9 + $0x48] sm:$0xff]
    %v1023 = vld [vmem:[%s9 + $0x50] sm:$0xff]
    %v1024 = vld [vmem:[%s9 + $0x58] sm:$0xff]
    %v1025 = vld [vmem:[%s9 + $0x60] sm:$0xff]
    %v1026 = vld [vmem:[%s9 + $0x68] sm:$0xff]
    %v1027 = vld [vmem:[%s9 + $0x70] sm:$0xff]
    %v1028 = vld [vmem:[%s9 + $0x78] sm:$0xff]
    %1030 = vset.pattern.permute.xlu0 0
    %1031 = vperm.xlu0 %1030, %v1013
    %v1032 = vpop.permute.xlu0 %1031
    %1035 = vset.pattern.permute.xlu0 0
    %1036 = vperm.xlu0 %1035, %v1014
    %v1037 = vpop.permute.xlu0 %1036
    %1040 = vset.pattern.permute.xlu0 0
    %1041 = vperm.xlu0 %1040, %v1015
    %v1042 = vpop.permute.xlu0 %1041
    %1045 = vset.pattern.permute.xlu0 0
    %1046 = vperm.xlu0 %1045, %v1016
    %v1047 = vpop.permute.xlu0 %1046
    %1050 = vset.pattern.permute.xlu0 0
    %1051 = vperm.xlu0 %1050, %v1017
    %v1052 = vpop.permute.xlu0 %1051
    %1055 = vset.pattern.permute.xlu0 0
    %1056 = vperm.xlu0 %1055, %v1018
    %v1057 = vpop.permute.xlu0 %1056
    %1060 = vset.pattern.permute.xlu0 0
    %1061 = vperm.xlu0 %1060, %v1019
    %v1062 = vpop.permute.xlu0 %1061
    %1065 = vset.pattern.permute.xlu0 0
    %1066 = vperm.xlu0 %1065, %v1020
    %v1067 = vpop.permute.xlu0 %1066
    %1070 = vset.pattern.permute.xlu0 0
    %1071 = vperm.xlu0 %1070, %v1021
    %v1072 = vpop.permute.xlu0 %1071
    %1075 = vset.pattern.permute.xlu0 0
    %1076 = vperm.xlu0 %1075, %v1022
    %v1077 = vpop.permute.xlu0 %1076
    %1080 = vset.pattern.permute.xlu0 0
    %1081 = vperm.xlu0 %1080, %v1023
    %v1082 = vpop.permute.xlu0 %1081
    %1085 = vset.pattern.permute.xlu0 0
    %1086 = vperm.xlu0 %1085, %v1024
    %v1087 = vpop.permute.xlu0 %1086
    %1090 = vset.pattern.permute.xlu0 0
    %1091 = vperm.xlu0 %1090, %v1025
    %v1092 = vpop.permute.xlu0 %1091
    %1095 = vset.pattern.permute.xlu0 0
    %1096 = vperm.xlu0 %1095, %v1026
    %v1097 = vpop.permute.xlu0 %1096
    %1100 = vset.pattern.permute.xlu0 0
    %1101 = vperm.xlu0 %1100, %v1027
    %v1102 = vpop.permute.xlu0 %1101
    %1105 = vset.pattern.permute.xlu0 0
    %1106 = vperm.xlu0 %1105, %v1028
    %v1107 = vpop.permute.xlu0 %1106
    %vm1109 = vcmask 261120
    %v1111 = vsel %vm1109, %v997, 0
    %v1114 = vsel %vm1109, %v998, 0
    %v1117 = vsel %vm1109, %v999, 0
    %v1120 = vsel %vm1109, %v1000, 0
    %v1123 = vsel %vm1109, %v1001, 0
    %v1126 = vsel %vm1109, %v1002, 0
    %v1129 = vsel %vm1109, %v1003, 0
    %v1132 = vsel %vm1109, %v1004, 0
    %v1135 = vsel %vm1109, %v1005, 0
    %v1138 = vsel %vm1109, %v1006, 0
    %v1141 = vsel %vm1109, %v1007, 0
    %v1144 = vsel %vm1109, %v1008, 0
    %v1147 = vsel %vm1109, %v1009, 0
    %v1150 = vsel %vm1109, %v1010, 0
    %v1153 = vsel %vm1109, %v1011, 0
    %v1156 = vsel %vm1109, %v1012, 0
    %1158 = vmatprep.subr.mxu0 0.0
    %1159 = vmatpush1.msra.mxu0 %v993
    %1160 = vmatprep.subr.mxu0 0.0
    %1161 = vmatpush1.msra.mxu0 %v994
    %1162 = vmatprep.subr.mxu0 0.0
    %1163 = vmatpush1.msra.mxu0 %v995
    %1164 = vmatprep.subr.mxu0 0.0
    %1165 = vmatpush1.msra.mxu0 %v996
    %1166 = vmatprep.subr.mxu0 0.0
    %1167 = vmatpush1.msra.mxu0 0.0
    %1168 = vmatprep.subr.mxu0 0.0
    %1169 = vmatpush1.msra.mxu0 0.0
    %1170 = vmatprep.subr.mxu0 0.0
    %1171 = vmatpush1.msra.mxu0 0.0
    %1172 = vmatprep.subr.mxu0 0.0
    %1173 = vmatpush1.msra.mxu0 0.0
    %1174 = vmatprep.subr.mxu0 0.0
    %1175 = vmatpush1.msra.mxu0 0.0
    %1176 = vmatprep.subr.mxu0 0.0
    %1177 = vmatpush1.msra.mxu0 0.0
    %1178 = vmatprep.subr.mxu0 0.0
    %1179 = vmatpush1.msra.mxu0 0.0
    %1180 = vmatprep.subr.mxu0 0.0
    %1181 = vmatpush1.msra.mxu0 0.0
    %1182 = vmatprep.subr.mxu0 0.0
    %1183 = vmatpush1.msra.mxu0 0.0
    %1184 = vmatprep.subr.mxu0 0.0
    %1185 = vmatpush1.msra.mxu0 0.0
    %1186 = vmatprep.subr.mxu0 0.0
    %1187 = vmatpush1.msra.mxu0 0.0
    %1188 = vmatprep.subr.mxu0 0.0
    %1189 = vmatpush1.msra.mxu0 0.0
    %1190 = vmatprep.subr.mxu0 0.0
    %1191 = vmatpush1.msra.mxu0 0.0
    %1192 = vmatprep.subr.mxu0 0.0
    %1193 = vmatpush1.msra.mxu0 0.0
    %1194 = vmatprep.subr.mxu0 0.0
    %1195 = vmatpush1.msra.mxu0 0.0
    %1196 = vmatprep.subr.mxu0 0.0
    %1197 = vmatpush1.msra.mxu0 0.0
    %1198 = vmatprep.subr.mxu0 0.0
    %1199 = vmatpush1.msra.mxu0 0.0
    %1200 = vmatprep.subr.mxu0 0.0
    %1201 = vmatpush1.msra.mxu0 0.0
    %1202 = vmatprep.subr.mxu0 0.0
    %1203 = vmatpush1.msra.mxu0 0.0
    %1204 = vmatprep.subr.mxu0 0.0
    %1205 = vmatpush1.msra.mxu0 0.0
    %1206 = vmatprep.subr.mxu0 0.0
    %1207 = vmatpush1.msra.mxu0 0.0
    %1208 = vmatprep.subr.mxu0 0.0
    %1209 = vmatpush1.msra.mxu0 0.0
    %1210 = vmatprep.subr.mxu0 0.0
    %1211 = vmatpush1.msra.mxu0 0.0
    %1212 = vmatprep.subr.mxu0 0.0
    %1213 = vmatpush1.msra.mxu0 0.0
    %1214 = vmatprep.subr.mxu0 0.0
    %1215 = vmatpush1.msra.mxu0 0.0
    %1216 = vmatprep.subr.mxu0 0.0
    %1217 = vmatpush1.msra.mxu0 0.0
    %1218 = vmatprep.subr.mxu0 0.0
    %1219 = vmatpush1.msra.mxu0 0.0
    %1220 = vmatprep.subr.mxu0 0.0
    %1221 = vmatpush1.msra.mxu0 0.0
    %1222 = vmatprep.mubr.f32.mxu0 0.0
    %1223 = vmatmul.mubr.f32.gmra.mrb[0].mxu0 %v1111
    %v1224 = vpop.f32.mrb[0].mxu0
    %v1225 = vadd.f32 %v1032, %v1224
    %v1226 = vpop.f32.mrb[0].mxu0
    %1227 = vmatprep.mubr.f32.mxu0 0.0
    %1228 = vmatmul.mubr.f32.gmra.mrb[0].mxu0 %v1114
    %v1229 = vpop.f32.mrb[0].mxu0
    %v1230 = vadd.f32 %v1037, %v1229
    %v1231 = vpop.f32.mrb[0].mxu0
    %1232 = vmatprep.mubr.f32.mxu0 0.0
    %1233 = vmatmul.mubr.f32.gmra.mrb[0].mxu0 %v1117
    %v1234 = vpop.f32.mrb[0].mxu0
    %v1235 = vadd.f32 %v1042, %v1234
    %v1236 = vpop.f32.mrb[0].mxu0
    %1237 = vmatprep.mubr.f32.mxu0 0.0
    %1238 = vmatmul.mubr.f32.gmra.mrb[0].mxu0 %v1120
    %v1239 = vpop.f32.mrb[0].mxu0
    %v1240 = vadd.f32 %v1047, %v1239
    %v1241 = vpop.f32.mrb[0].mxu0
    %1242 = vmatprep.mubr.f32.mxu0 0.0
    %1243 = vmatmul.mubr.f32.gmra.mrb[0].mxu0 %v1123
    %v1244 = vpop.f32.mrb[0].mxu0
    %v1245 = vadd.f32 %v1052, %v1244
    %v1246 = vpop.f32.mrb[0].mxu0
    %1247 = vmatprep.mubr.f32.mxu0 0.0
    %1248 = vmatmul.mubr.f32.gmra.mrb[0].mxu0 %v1126
    %v1249 = vpop.f32.mrb[0].mxu0
    %v1250 = vadd.f32 %v1057, %v1249
    %v1251 = vpop.f32.mrb[0].mxu0
    %1252 = vmatprep.mubr.f32.mxu0 0.0
    %1253 = vmatmul.mubr.f32.gmra.mrb[0].mxu0 %v1129
    %v1254 = vpop.f32.mrb[0].mxu0
    %v1255 = vadd.f32 %v1062, %v1254
    %v1256 = vpop.f32.mrb[0].mxu0
    %1257 = vmatprep.mubr.f32.mxu0 0.0
    %1258 = vmatmul.mubr.f32.gmra.mrb[0].mxu0 %v1132
    %v1259 = vpop.f32.mrb[0].mxu0
    %v1260 = vadd.f32 %v1067, %v1259
    %v1261 = vpop.f32.mrb[0].mxu0
    %1262 = vmatprep.mubr.f32.mxu0 0.0
    %1263 = vmatmul.mubr.f32.gmra.mrb[0].mxu0 %v1135
    %v1264 = vpop.f32.mrb[0].mxu0
    %v1265 = vadd.f32 %v1072, %v1264
    %v1266 = vpop.f32.mrb[0].mxu0
    %1267 = vmatprep.mubr.f32.mxu0 0.0
    %1268 = vmatmul.mubr.f32.gmra.mrb[0].mxu0 %v1138
    %v1269 = vpop.f32.mrb[0].mxu0
    %v1270 = vadd.f32 %v1077, %v1269
    %v1271 = vpop.f32.mrb[0].mxu0
    %1272 = vmatprep.mubr.f32.mxu0 0.0
    %1273 = vmatmul.mubr.f32.gmra.mrb[0].mxu0 %v1141
    %v1274 = vpop.f32.mrb[0].mxu0
    %v1275 = vadd.f32 %v1082, %v1274
    %v1276 = vpop.f32.mrb[0].mxu0
    %1277 = vmatprep.mubr.f32.mxu0 0.0
    %1278 = vmatmul.mubr.f32.gmra.mrb[0].mxu0 %v1144
    %v1279 = vpop.f32.mrb[0].mxu0
    %v1280 = vadd.f32 %v1087, %v1279
    %v1281 = vpop.f32.mrb[0].mxu0
    %1282 = vmatprep.mubr.f32.mxu0 0.0
    %1283 = vmatmul.mubr.f32.gmra.mrb[0].mxu0 %v1147
    %v1284 = vpop.f32.mrb[0].mxu0
    %v1285 = vadd.f32 %v1092, %v1284
    %v1286 = vpop.f32.mrb[0].mxu0
    %1287 = vmatprep.mubr.f32.mxu0 0.0
    %1288 = vmatmul.mubr.f32.gmra.mrb[0].mxu0 %v1150
    %v1289 = vpop.f32.mrb[0].mxu0
    %v1290 = vadd.f32 %v1097, %v1289
    %v1291 = vpop.f32.mrb[0].mxu0
    %1292 = vmatprep.mubr.f32.mxu0 0.0
    %1293 = vmatmul.mubr.f32.gmra.mrb[0].mxu0 %v1153
    %v1294 = vpop.f32.mrb[0].mxu0
    %v1295 = vadd.f32 %v1102, %v1294
    %v1296 = vpop.f32.mrb[0].mxu0
    %1297 = vmatprep.mubr.f32.mxu0 0.0
    %1298 = vmatmul.mubr.f32.gmra.mrb[0].mxu0 %v1156
    %v1299 = vpop.f32.mrb[0].mxu0
    %v1300 = vadd.f32 %v1107, %v1299
    %v1301 = vpop.f32.mrb[0].mxu0
    %1302 = vdwg.mxu0
    %v1303 = vmax.f32 %v1225, 0.0
    %v1304 = vmax.f32 %v1230, 0.0
    %v1305 = vmax.f32 %v1235, 0.0
    %v1306 = vmax.f32 %v1240, 0.0
    %v1307 = vmax.f32 %v1245, 0.0
    %v1308 = vmax.f32 %v1250, 0.0
    %v1309 = vmax.f32 %v1255, 0.0
    %v1310 = vmax.f32 %v1260, 0.0
    %v1311 = vmax.f32 %v1265, 0.0
    %v1312 = vmax.f32 %v1270, 0.0
    %v1313 = vmax.f32 %v1275, 0.0
    %v1314 = vmax.f32 %v1280, 0.0
    %v1315 = vmax.f32 %v1285, 0.0
    %v1316 = vmax.f32 %v1290, 0.0
    %v1317 = vmax.f32 %v1295, 0.0
    %v1318 = vmax.f32 %v1300, 0.0
    %v1319 = vld [vmem:[%s10] sm:$0xff]
    %v1320 = vld [vmem:[%s10 + $0x8] sm:$0xff]
    %v1321 = vld [vmem:[%s11] sm:$0xff]
    %v1322 = vld [vmem:[%s11 + $0x8] sm:$0xff]
    %1324 = vset.pattern.permute.xlu0 0
    %1325 = vperm.xlu0 %1324, %v1321
    %v1326 = vpop.permute.xlu0 %1325
    %1329 = vset.pattern.permute.xlu0 0
    %1330 = vperm.xlu0 %1329, %v1322
    %v1331 = vpop.permute.xlu0 %1330
    %1333 = vmatprep.subr.mxu0 0.0
    %1334 = vmatpush1.msra.mxu0 %v1303
    %1335 = vmatprep.subr.mxu0 0.0
    %1336 = vmatpush1.msra.mxu0 %v1304
    %1337 = vmatprep.subr.mxu0 0.0
    %1338 = vmatpush1.msra.mxu0 %v1305
    %1339 = vmatprep.subr.mxu0 0.0
    %1340 = vmatpush1.msra.mxu0 %v1306
    %1341 = vmatprep.subr.mxu0 0.0
    %1342 = vmatpush1.msra.mxu0 %v1307
    %1343 = vmatprep.subr.mxu0 0.0
    %1344 = vmatpush1.msra.mxu0 %v1308
    %1345 = vmatprep.subr.mxu0 0.0
    %1346 = vmatpush1.msra.mxu0 %v1309
    %1347 = vmatprep.subr.mxu0 0.0
    %1348 = vmatpush1.msra.mxu0 %v1310
    %1349 = vmatprep.subr.mxu0 0.0
    %1350 = vmatpush1.msra.mxu0 %v1311
    %1351 = vmatprep.subr.mxu0 0.0
    %1352 = vmatpush1.msra.mxu0 %v1312
    %1353 = vmatprep.subr.mxu0 0.0
    %1354 = vmatpush1.msra.mxu0 %v1313
    %1355 = vmatprep.subr.mxu0 0.0
    %1356 = vmatpush1.msra.mxu0 %v1314
    %1357 = vmatprep.subr.mxu0 0.0
    %1358 = vmatpush1.msra.mxu0 %v1315
    %1359 = vmatprep.subr.mxu0 0.0
    %1360 = vmatpush1.msra.mxu0 %v1316
    %1361 = vmatprep.subr.mxu0 0.0
    %1362 = vmatpush1.msra.mxu0 %v1317
    %1363 = vmatprep.subr.mxu0 0.0
    %1364 = vmatpush1.msra.mxu0 %v1318
    %1365 = vmatprep.subr.mxu0 0.0
    %1366 = vmatpush1.msra.mxu0 0.0
    %1367 = vmatprep.subr.mxu0 0.0
    %1368 = vmatpush1.msra.mxu0 0.0
    %1369 = vmatprep.subr.mxu0 0.0
    %1370 = vmatpush1.msra.mxu0 0.0
    %1371 = vmatprep.subr.mxu0 0.0
    %1372 = vmatpush1.msra.mxu0 0.0
    %1373 = vmatprep.subr.mxu0 0.0
    %1374 = vmatpush1.msra.mxu0 0.0
    %1375 = vmatprep.subr.mxu0 0.0
    %1376 = vmatpush1.msra.mxu0 0.0
    %1377 = vmatprep.subr.mxu0 0.0
    %1378 = vmatpush1.msra.mxu0 0.0
    %1379 = vmatprep.subr.mxu0 0.0
    %1380 = vmatpush1.msra.mxu0 0.0
    %1381 = vmatprep.subr.mxu0 0.0
    %1382 = vmatpush1.msra.mxu0 0.0
    %1383 = vmatprep.subr.mxu0 0.0
    %1384 = vmatpush1.msra.mxu0 0.0
    %1385 = vmatprep.subr.mxu0 0.0
    %1386 = vmatpush1.msra.mxu0 0.0
    %1387 = vmatprep.subr.mxu0 0.0
    %1388 = vmatpush1.msra.mxu0 0.0
    %1389 = vmatprep.subr.mxu0 0.0
    %1390 = vmatpush1.msra.mxu0 0.0
    %1391 = vmatprep.subr.mxu0 0.0
    %1392 = vmatpush1.msra.mxu0 0.0
    %1393 = vmatprep.subr.mxu0 0.0
    %1394 = vmatpush1.msra.mxu0 0.0
    %1395 = vmatprep.subr.mxu0 0.0
    %1396 = vmatpush1.msra.mxu0 0.0
    %1397 = vmatprep.mubr.f32.mxu0 0.0
    %1398 = vmatmul.mubr.f32.gmra.mrb[0].mxu0 %v1319
    %v1399 = vpop.f32.mrb[0].mxu0
    %v1400 = vadd.f32 %v1326, %v1399
    %v1401 = vpop.f32.mrb[0].mxu0
    %1402 = vmatprep.mubr.f32.mxu0 0.0
    %1403 = vmatmul.mubr.f32.gmra.mrb[0].mxu0 %v1320
    %v1404 = vpop.f32.mrb[0].mxu0
    %v1405 = vadd.f32 %v1331, %v1404
    %v1406 = vpop.f32.mrb[0].mxu0
    %1407 = vdwg.mxu0
    %1408 = vst [vmem:[#allocation2] sm:$0xff] %v1400
    %1409 = vst [vmem:[#allocation2 + $0x8] sm:$0xff] %v1405
    // Predicated region
    $region50: #{tpu_custom_call.1} parent=1 // pred_check
      _
    $region51: #{tpu_custom_call.1} parent=1 // pred_check_branch
      %1411 = sbr.rel (0) target = $region53
    $region52: #{tpu_custom_call.1} parent=1 // pred_region
      %s1413 = ssub.s32 256, 256
      %1414 = vsyncadd [#allocation3], %s1413
      %s1415 = sshll.u32 [#allocation2], 4
      %s1416 = int_to_ptr.vmem [resolvable:$true] %s1415
      %1421 = dma.vmem_to_hbm [thread:$0]  %s1416, 256, %s12, [#allocation3], 128, 128, 8
    $region53: #{tpu_custom_call.1} parent=1 // pred_fallthru
      _
    // Predicated region
    $region54: #{tpu_custom_call.1} parent=1 // pred_check
      _
    $region55: #{tpu_custom_call.1} parent=1 // pred_check_branch
      %1423 = sbr.rel (0) target = $region57
    $region56: #{tpu_custom_call.1} parent=1 // pred_region
      %1424 = dma.done [#allocation3], 256
    $region57: #{tpu_custom_call.1} parent=1 // pred_fallthru
      _
    %1425 = vsyncpa [#allocation3], 1

</llo_original>
